<compile_context>
chip_gen: v7x
topology: tpu7x:2x2x1
jax: 0.10.0
libtpu: 0.0.40
codegen_flags: <defaults>
</compile_context>

<pallas_src>
from functools import partial

import jax
import jax.numpy as jnp
from jax.experimental import pallas as pl
from jax.experimental.pallas import tpu as pltpu

HIDDEN = 128
N_LAYERS = 4
LANE_PAD = 128  # lane-dense output width for the fc/softmax epilogue


def rnn_kernel(emb_ref, h0_ref, wih_ref, whh_ref, bias_ref, fcw_ref, fcb_ref,
               out_ref):
    # emb_ref : (S, H)     bf16  embedded inputs for the last batch row,
    #                            zero-padded word_dim -> H
    # h0_ref  : (L, 1, H)  f32   initial hidden (last batch row) per layer
    # wih_ref : (L, H, H)  bf16  W_ih^T per layer (layer 0 zero-padded rows)
    # whh_ref : (L, H, H)  bf16  W_hh^T per layer
    # bias_ref: (L, 1, H)  f32   folded b_ih + b_hh per layer
    # fcw_ref : (H, 128)   bf16  fc weights^T, zero-padded to 128 lanes
    # fcb_ref : (1, 128)   f32   fc bias, pad lanes filled with -1e30
    # out_ref : (S, 128)   f32   softmax probabilities (padded lanes -> 0)
    S, H = emb_ref.shape
    n_layers = h0_ref.shape[0]

    x_seq = emb_ref[...]                                      # (S, H) bf16
    for l in range(n_layers):
        # Batched input projection: one (S,H)x(H,H) MXU dot, off the serial
        # dependency chain; folded bias added once per layer.
        u = jnp.dot(x_seq, wih_ref[l],
                    preferred_element_type=jnp.float32) + bias_ref[l]  # (S,H) f32
        w_hh = whh_ref[l]                                     # loaded once, reused S times
        h = h0_ref[l].astype(jnp.bfloat16)                    # (1, H) bf16
        rows = []
        # Serial recurrence: single native K=128 pass per step, statically
        # unrolled (S is tiny) so the scheduler overlaps MXU drain / tanh.
        for t in range(S):
            pre = u[t:t + 1, :] + jnp.dot(h, w_hh,
                                          preferred_element_type=jnp.float32)
            h = jnp.tanh(pre).astype(jnp.bfloat16)            # (1, H)
            rows.append(h)
        x_seq = jnp.concatenate(rows, axis=0)                 # (S, H) bf16

    # fc + softmax epilogue, lane-dense (128 wide); logits stay f32 so the
    # -1e30 pad-lane bias underflows cleanly to probability 0.
    logits = jnp.dot(x_seq, fcw_ref[...],
                     preferred_element_type=jnp.float32) + fcb_ref[...]
    m = jnp.max(logits, axis=1, keepdims=True)
    e = jnp.exp(logits - m)
    out_ref[...] = e / jnp.sum(e, axis=1, keepdims=True)


def prepare_params(params):
    """One-time weight re-layout (run once at init, NOT per forward)."""
    emb_mat, wih0, wih_rest, whh, bih, bhh, fcw, fcb = params
    H = HIDDEN
    D = emb_mat.shape[1]
    n_labels = fcw.shape[0]
    assert D <= H and n_labels <= LANE_PAD

    # Layer-0 W_ih^T zero-padded from D to H rows (matches zero-padded input).
    wih0_t = jnp.zeros((H, H), jnp.float32).at[:D, :].set(wih0.T)
    wih_t = jnp.concatenate(
        [wih0_t[None], jnp.transpose(wih_rest, (0, 2, 1))],
        axis=0).astype(jnp.bfloat16)                          # (L, H, H)
    whh_t = jnp.transpose(whh, (0, 2, 1)).astype(jnp.bfloat16)  # (L, H, H)
    bias = (bih + bhh)[:, None, :].astype(jnp.float32)          # (L, 1, H)

    fcw_pad = (jnp.zeros((H, LANE_PAD), jnp.float32)
               .at[:, :n_labels].set(fcw.T).astype(jnp.bfloat16))
    fcb_pad = jnp.full((1, LANE_PAD), -1e30,
                       jnp.float32).at[0, :n_labels].set(fcb)

    fused = (emb_mat.astype(jnp.float32), wih_t, whh_t, bias, fcw_pad, fcb_pad)
    return fused, n_labels


@partial(jax.jit, static_argnames=("label_size",))
def rnn_forward(x_idx, h0, fused, *, label_size):
    emb_mat, wih_t, whh_t, bias, fcw_pad, fcb_pad = fused
    S, B = x_idx.shape
    H = HIDDEN
    D = emb_mat.shape[1]

    # Only batch row B-1 of the top layer feeds fc/softmax (x[:, -1, :]) and
    # RNN batch rows are independent -> process just that row.
    ids = x_idx[:, B - 1]                                     # (S,)
    emb = emb_mat[ids]                                        # (S, D) f32  (gather glue)
    emb_pad = (jnp.zeros((S, H), jnp.float32)
               .at[:, :D].set(emb).astype(jnp.bfloat16))      # (S, H) bf16
    h0_last = h0[:, B - 1:B, :].astype(jnp.float32)           # (L, 1, H)

    vmem = pl.BlockSpec(memory_space=pltpu.MemorySpace.VMEM)
    out_pad = pl.pallas_call(
        rnn_kernel,
        out_shape=jax.ShapeDtypeStruct((S, LANE_PAD), jnp.float32),
        in_specs=[vmem] * 7,
        out_specs=vmem,
    )(emb_pad, h0_last, wih_t, whh_t, bias, fcw_pad, fcb_pad)
    return out_pad[:, :label_size]


def rnn_reference(x_idx, h0, params):
    """Pure-JAX reference mirroring the PyTorch forward exactly."""
    emb_mat, wih0, wih_rest, whh, bih, bhh, fcw, fcb = params
    emb = emb_mat[x_idx]                                      # (S, B, D)
    S = emb.shape[0]
    hp = jax.lax.Precision.HIGHEST
    h = [h0[l] for l in range(N_LAYERS)]
    outs = []
    for t in range(S):
        inp = emb[t]
        for l in range(N_LAYERS):
            w_ih = wih0 if l == 0 else wih_rest[l - 1]
            pre = (jnp.matmul(inp, w_ih.T, precision=hp)
                   + jnp.matmul(h[l], whh[l].T, precision=hp)
                   + bih[l] + bhh[l])
            h[l] = jnp.tanh(pre)
            inp = h[l]
        outs.append(inp)
    out = jnp.stack(outs)                                     # (S, B, H)
    last = out[:, -1, :]                                      # (S, H)
    logits = jnp.matmul(last, fcw.T, precision=hp) + fcb
    return jax.nn.softmax(logits, axis=1)


if __name__ == "__main__":
    # Small synthetic configuration (hidden=128, n_layers=4 fixed by module).
    VOCAB = 50
    WORD_DIM = 32
    LABELS = 4
    S, B = 6, 8                                               # x: (S, B) ids

    key = jax.random.PRNGKey(0)
    keys = jax.random.split(key, 16)
    k = 1.0 / jnp.sqrt(jnp.float32(HIDDEN))

    emb_mat = jax.random.normal(keys[0], (VOCAB, WORD_DIM), jnp.float32)
    wih0 = jax.random.uniform(keys[1], (HIDDEN, WORD_DIM), jnp.float32, -k, k)
    wih_rest = jax.random.uniform(keys[2], (N_LAYERS - 1, HIDDEN, HIDDEN),
                                  jnp.float32, -k, k)
    whh = jax.random.uniform(keys[3], (N_LAYERS, HIDDEN, HIDDEN),
                             jnp.float32, -k, k)
    bih = jax.random.uniform(keys[4], (N_LAYERS, HIDDEN), jnp.float32, -k, k)
    bhh = jax.random.uniform(keys[5], (N_LAYERS, HIDDEN), jnp.float32, -k, k)
    fcw = jax.random.uniform(keys[6], (LABELS, HIDDEN), jnp.float32, -k, k)
    fcb = jax.random.uniform(keys[7], (LABELS,), jnp.float32, -k, k)
    params = (emb_mat, wih0, wih_rest, whh, bih, bhh, fcw, fcb)

    x_idx = jax.random.randint(keys[8], (S, B), 0, VOCAB, jnp.int32)
    h0 = jnp.zeros((N_LAYERS, B, HIDDEN), jnp.float32)        # initial_hid

    # One-time re-layout, off the per-call path.
    fused, label_size = prepare_params(params)
    fused = jax.block_until_ready(fused)

    out = jax.block_until_ready(
        rnn_forward(x_idx, h0, fused, label_size=label_size))

    # Sanity: softmax rows sum to 1 and values are finite.
    assert out.shape == (S, LABELS)
    assert bool(jnp.all(jnp.isfinite(out)))
    assert bool(jnp.allclose(jnp.sum(out, axis=1), 1.0, atol=1e-4))

    ref = rnn_reference(x_idx, h0, params)
    assert bool(jnp.allclose(out, ref, atol=1e-2, rtol=1e-2))

    print("KERNEL_OK")
</pallas_src>

<mosaic_0001>
module attributes {stable_mosaic.version = 11 : i64} {
  func.func @rnn_kernel(%arg0: memref<6x128xbf16, #tpu.memory_space<vmem>>, %arg1: memref<4x1x128xf32, #tpu.memory_space<vmem>>, %arg2: memref<4x128x128xbf16, #tpu.memory_space<vmem>>, %arg3: memref<4x128x128xbf16, #tpu.memory_space<vmem>>, %arg4: memref<4x1x128xf32, #tpu.memory_space<vmem>>, %arg5: memref<128x128xbf16, #tpu.memory_space<vmem>>, %arg6: memref<1x128xf32, #tpu.memory_space<vmem>>, %arg7: memref<6x128xf32, #tpu.memory_space<vmem>>) attributes {dimension_semantics = [], scalar_prefetch = 0 : i64, scratch_operands = 0 : i64, tpu.core_type = #tpu.core_type<tc>} {
    %c0 = arith.constant 0 : index
    %c0_0 = arith.constant 0 : index
    %0 = vector.load %arg0[%c0, %c0_0] : memref<6x128xbf16, #tpu.memory_space<vmem>>, vector<6x128xbf16>
    %c0_1 = arith.constant 0 : index
    %c0_2 = arith.constant 0 : index
    %c0_3 = arith.constant 0 : index
    %1 = vector.load %arg2[%c0_1, %c0_2, %c0_3] : memref<4x128x128xbf16, #tpu.memory_space<vmem>>, vector<1x128x128xbf16>
    %2 = vector.shape_cast %1 : vector<1x128x128xbf16> to vector<128x128xbf16>
    %cst = arith.constant dense<0.000000e+00> : vector<6x128xf32>
    %3 = tpu.matmul %0, %2, %cst {dimension_numbers = #tpu.dot_dimension_numbers<[1], [0], [0], [1], [0, 0, 1, 1], [], []>} : vector<6x128xbf16>, vector<128x128xbf16>, vector<6x128xf32> -> vector<6x128xf32>
    %c0_4 = arith.constant 0 : index
    %c0_5 = arith.constant 0 : index
    %c0_6 = arith.constant 0 : index
    %4 = vector.load %arg4[%c0_4, %c0_5, %c0_6] : memref<4x1x128xf32, #tpu.memory_space<vmem>>, vector<1x1x128xf32>
    %5 = vector.shape_cast %4 : vector<1x1x128xf32> to vector<1x128xf32>
    %6 = vector.broadcast %5 : vector<1x128xf32> to vector<6x128xf32>
    %7 = arith.addf %3, %6 : vector<6x128xf32>
    %c0_7 = arith.constant 0 : index
    %c0_8 = arith.constant 0 : index
    %c0_9 = arith.constant 0 : index
    %8 = vector.load %arg3[%c0_7, %c0_8, %c0_9] : memref<4x128x128xbf16, #tpu.memory_space<vmem>>, vector<1x128x128xbf16>
    %9 = vector.shape_cast %8 : vector<1x128x128xbf16> to vector<128x128xbf16>
    %c0_10 = arith.constant 0 : index
    %c0_11 = arith.constant 0 : index
    %c0_12 = arith.constant 0 : index
    %10 = vector.load %arg1[%c0_10, %c0_11, %c0_12] : memref<4x1x128xf32, #tpu.memory_space<vmem>>, vector<1x1x128xf32>
    %11 = vector.shape_cast %10 : vector<1x1x128xf32> to vector<1x128xf32>
    %12 = arith.truncf %11 : vector<1x128xf32> to vector<1x128xbf16>
    %13 = vector.extract_strided_slice %7 {offsets = [0, 0], sizes = [1, 128], strides = [1, 1]} : vector<6x128xf32> to vector<1x128xf32>
    %cst_13 = arith.constant dense<0.000000e+00> : vector<1x128xf32>
    %14 = tpu.matmul %12, %9, %cst_13 {dimension_numbers = #tpu.dot_dimension_numbers<[1], [0], [0], [1], [0, 0, 1, 1], [], []>} : vector<1x128xbf16>, vector<128x128xbf16>, vector<1x128xf32> -> vector<1x128xf32>
    %15 = arith.addf %13, %14 : vector<1x128xf32>
    %16 = math.tanh %15 : vector<1x128xf32>
    %17 = arith.truncf %16 : vector<1x128xf32> to vector<1x128xbf16>
    %18 = vector.extract_strided_slice %7 {offsets = [1, 0], sizes = [1, 128], strides = [1, 1]} : vector<6x128xf32> to vector<1x128xf32>
    %cst_14 = arith.constant dense<0.000000e+00> : vector<1x128xf32>
    %19 = tpu.matmul %17, %9, %cst_14 {dimension_numbers = #tpu.dot_dimension_numbers<[1], [0], [0], [1], [0, 0, 1, 1], [], []>} : vector<1x128xbf16>, vector<128x128xbf16>, vector<1x128xf32> -> vector<1x128xf32>
    %20 = arith.addf %18, %19 : vector<1x128xf32>
    %21 = math.tanh %20 : vector<1x128xf32>
    %22 = arith.truncf %21 : vector<1x128xf32> to vector<1x128xbf16>
    %23 = vector.extract_strided_slice %7 {offsets = [2, 0], sizes = [1, 128], strides = [1, 1]} : vector<6x128xf32> to vector<1x128xf32>
    %cst_15 = arith.constant dense<0.000000e+00> : vector<1x128xf32>
    %24 = tpu.matmul %22, %9, %cst_15 {dimension_numbers = #tpu.dot_dimension_numbers<[1], [0], [0], [1], [0, 0, 1, 1], [], []>} : vector<1x128xbf16>, vector<128x128xbf16>, vector<1x128xf32> -> vector<1x128xf32>
    %25 = arith.addf %23, %24 : vector<1x128xf32>
    %26 = math.tanh %25 : vector<1x128xf32>
    %27 = arith.truncf %26 : vector<1x128xf32> to vector<1x128xbf16>
    %28 = vector.extract_strided_slice %7 {offsets = [3, 0], sizes = [1, 128], strides = [1, 1]} : vector<6x128xf32> to vector<1x128xf32>
    %cst_16 = arith.constant dense<0.000000e+00> : vector<1x128xf32>
    %29 = tpu.matmul %27, %9, %cst_16 {dimension_numbers = #tpu.dot_dimension_numbers<[1], [0], [0], [1], [0, 0, 1, 1], [], []>} : vector<1x128xbf16>, vector<128x128xbf16>, vector<1x128xf32> -> vector<1x128xf32>
    %30 = arith.addf %28, %29 : vector<1x128xf32>
    %31 = math.tanh %30 : vector<1x128xf32>
    %32 = arith.truncf %31 : vector<1x128xf32> to vector<1x128xbf16>
    %33 = vector.extract_strided_slice %7 {offsets = [4, 0], sizes = [1, 128], strides = [1, 1]} : vector<6x128xf32> to vector<1x128xf32>
    %cst_17 = arith.constant dense<0.000000e+00> : vector<1x128xf32>
    %34 = tpu.matmul %32, %9, %cst_17 {dimension_numbers = #tpu.dot_dimension_numbers<[1], [0], [0], [1], [0, 0, 1, 1], [], []>} : vector<1x128xbf16>, vector<128x128xbf16>, vector<1x128xf32> -> vector<1x128xf32>
    %35 = arith.addf %33, %34 : vector<1x128xf32>
    %36 = math.tanh %35 : vector<1x128xf32>
    %37 = arith.truncf %36 : vector<1x128xf32> to vector<1x128xbf16>
    %38 = vector.extract_strided_slice %7 {offsets = [5, 0], sizes = [1, 128], strides = [1, 1]} : vector<6x128xf32> to vector<1x128xf32>
    %cst_18 = arith.constant dense<0.000000e+00> : vector<1x128xf32>
    %39 = tpu.matmul %37, %9, %cst_18 {dimension_numbers = #tpu.dot_dimension_numbers<[1], [0], [0], [1], [0, 0, 1, 1], [], []>} : vector<1x128xbf16>, vector<128x128xbf16>, vector<1x128xf32> -> vector<1x128xf32>
    %40 = arith.addf %38, %39 : vector<1x128xf32>
    %41 = math.tanh %40 : vector<1x128xf32>
    %42 = arith.truncf %41 : vector<1x128xf32> to vector<1x128xbf16>
    %43 = tpu.concatenate %17, %22, %27, %32, %37, %42 in 0 : vector<1x128xbf16>, vector<1x128xbf16>, vector<1x128xbf16>, vector<1x128xbf16>, vector<1x128xbf16>, vector<1x128xbf16> -> vector<6x128xbf16>
    %c1 = arith.constant 1 : index
    %c0_19 = arith.constant 0 : index
    %c0_20 = arith.constant 0 : index
    %44 = vector.load %arg2[%c1, %c0_19, %c0_20] : memref<4x128x128xbf16, #tpu.memory_space<vmem>>, vector<1x128x128xbf16>
    %45 = vector.shape_cast %44 : vector<1x128x128xbf16> to vector<128x128xbf16>
    %cst_21 = arith.constant dense<0.000000e+00> : vector<6x128xf32>
    %46 = tpu.matmul %43, %45, %cst_21 {dimension_numbers = #tpu.dot_dimension_numbers<[1], [0], [0], [1], [0, 0, 1, 1], [], []>} : vector<6x128xbf16>, vector<128x128xbf16>, vector<6x128xf32> -> vector<6x128xf32>
    %c1_22 = arith.constant 1 : index
    %c0_23 = arith.constant 0 : index
    %c0_24 = arith.constant 0 : index
    %47 = vector.load %arg4[%c1_22, %c0_23, %c0_24] : memref<4x1x128xf32, #tpu.memory_space<vmem>>, vector<1x1x128xf32>
    %48 = vector.shape_cast %47 : vector<1x1x128xf32> to vector<1x128xf32>
    %49 = vector.broadcast %48 : vector<1x128xf32> to vector<6x128xf32>
    %50 = arith.addf %46, %49 : vector<6x128xf32>
    %c1_25 = arith.constant 1 : index
    %c0_26 = arith.constant 0 : index
    %c0_27 = arith.constant 0 : index
    %51 = vector.load %arg3[%c1_25, %c0_26, %c0_27] : memref<4x128x128xbf16, #tpu.memory_space<vmem>>, vector<1x128x128xbf16>
    %52 = vector.shape_cast %51 : vector<1x128x128xbf16> to vector<128x128xbf16>
    %c1_28 = arith.constant 1 : index
    %c0_29 = arith.constant 0 : index
    %c0_30 = arith.constant 0 : index
    %53 = vector.load %arg1[%c1_28, %c0_29, %c0_30] : memref<4x1x128xf32, #tpu.memory_space<vmem>>, vector<1x1x128xf32>
    %54 = vector.shape_cast %53 : vector<1x1x128xf32> to vector<1x128xf32>
    %55 = arith.truncf %54 : vector<1x128xf32> to vector<1x128xbf16>
    %56 = vector.extract_strided_slice %50 {offsets = [0, 0], sizes = [1, 128], strides = [1, 1]} : vector<6x128xf32> to vector<1x128xf32>
    %cst_31 = arith.constant dense<0.000000e+00> : vector<1x128xf32>
    %57 = tpu.matmul %55, %52, %cst_31 {dimension_numbers = #tpu.dot_dimension_numbers<[1], [0], [0], [1], [0, 0, 1, 1], [], []>} : vector<1x128xbf16>, vector<128x128xbf16>, vector<1x128xf32> -> vector<1x128xf32>
    %58 = arith.addf %56, %57 : vector<1x128xf32>
    %59 = math.tanh %58 : vector<1x128xf32>
    %60 = arith.truncf %59 : vector<1x128xf32> to vector<1x128xbf16>
    %61 = vector.extract_strided_slice %50 {offsets = [1, 0], sizes = [1, 128], strides = [1, 1]} : vector<6x128xf32> to vector<1x128xf32>
    %cst_32 = arith.constant dense<0.000000e+00> : vector<1x128xf32>
    %62 = tpu.matmul %60, %52, %cst_32 {dimension_numbers = #tpu.dot_dimension_numbers<[1], [0], [0], [1], [0, 0, 1, 1], [], []>} : vector<1x128xbf16>, vector<128x128xbf16>, vector<1x128xf32> -> vector<1x128xf32>
    %63 = arith.addf %61, %62 : vector<1x128xf32>
    %64 = math.tanh %63 : vector<1x128xf32>
    %65 = arith.truncf %64 : vector<1x128xf32> to vector<1x128xbf16>
    %66 = vector.extract_strided_slice %50 {offsets = [2, 0], sizes = [1, 128], strides = [1, 1]} : vector<6x128xf32> to vector<1x128xf32>
    %cst_33 = arith.constant dense<0.000000e+00> : vector<1x128xf32>
    %67 = tpu.matmul %65, %52, %cst_33 {dimension_numbers = #tpu.dot_dimension_numbers<[1], [0], [0], [1], [0, 0, 1, 1], [], []>} : vector<1x128xbf16>, vector<128x128xbf16>, vector<1x128xf32> -> vector<1x128xf32>
    %68 = arith.addf %66, %67 : vector<1x128xf32>
    %69 = math.tanh %68 : vector<1x128xf32>
    %70 = arith.truncf %69 : vector<1x128xf32> to vector<1x128xbf16>
    %71 = vector.extract_strided_slice %50 {offsets = [3, 0], sizes = [1, 128], strides = [1, 1]} : vector<6x128xf32> to vector<1x128xf32>
    %cst_34 = arith.constant dense<0.000000e+00> : vector<1x128xf32>
    %72 = tpu.matmul %70, %52, %cst_34 {dimension_numbers = #tpu.dot_dimension_numbers<[1], [0], [0], [1], [0, 0, 1, 1], [], []>} : vector<1x128xbf16>, vector<128x128xbf16>, vector<1x128xf32> -> vector<1x128xf32>
    %73 = arith.addf %71, %72 : vector<1x128xf32>
    %74 = math.tanh %73 : vector<1x128xf32>
    %75 = arith.truncf %74 : vector<1x128xf32> to vector<1x128xbf16>
    %76 = vector.extract_strided_slice %50 {offsets = [4, 0], sizes = [1, 128], strides = [1, 1]} : vector<6x128xf32> to vector<1x128xf32>
    %cst_35 = arith.constant dense<0.000000e+00> : vector<1x128xf32>
    %77 = tpu.matmul %75, %52, %cst_35 {dimension_numbers = #tpu.dot_dimension_numbers<[1], [0], [0], [1], [0, 0, 1, 1], [], []>} : vector<1x128xbf16>, vector<128x128xbf16>, vector<1x128xf32> -> vector<1x128xf32>
    %78 = arith.addf %76, %77 : vector<1x128xf32>
    %79 = math.tanh %78 : vector<1x128xf32>
    %80 = arith.truncf %79 : vector<1x128xf32> to vector<1x128xbf16>
    %81 = vector.extract_strided_slice %50 {offsets = [5, 0], sizes = [1, 128], strides = [1, 1]} : vector<6x128xf32> to vector<1x128xf32>
    %cst_36 = arith.constant dense<0.000000e+00> : vector<1x128xf32>
    %82 = tpu.matmul %80, %52, %cst_36 {dimension_numbers = #tpu.dot_dimension_numbers<[1], [0], [0], [1], [0, 0, 1, 1], [], []>} : vector<1x128xbf16>, vector<128x128xbf16>, vector<1x128xf32> -> vector<1x128xf32>
    %83 = arith.addf %81, %82 : vector<1x128xf32>
    %84 = math.tanh %83 : vector<1x128xf32>
    %85 = arith.truncf %84 : vector<1x128xf32> to vector<1x128xbf16>
    %86 = tpu.concatenate %60, %65, %70, %75, %80, %85 in 0 : vector<1x128xbf16>, vector<1x128xbf16>, vector<1x128xbf16>, vector<1x128xbf16>, vector<1x128xbf16>, vector<1x128xbf16> -> vector<6x128xbf16>
    %c2 = arith.constant 2 : index
    %c0_37 = arith.constant 0 : index
    %c0_38 = arith.constant 0 : index
    %87 = vector.load %arg2[%c2, %c0_37, %c0_38] : memref<4x128x128xbf16, #tpu.memory_space<vmem>>, vector<1x128x128xbf16>
    %88 = vector.shape_cast %87 : vector<1x128x128xbf16> to vector<128x128xbf16>
    %cst_39 = arith.constant dense<0.000000e+00> : vector<6x128xf32>
    %89 = tpu.matmul %86, %88, %cst_39 {dimension_numbers = #tpu.dot_dimension_numbers<[1], [0], [0], [1], [0, 0, 1, 1], [], []>} : vector<6x128xbf16>, vector<128x128xbf16>, vector<6x128xf32> -> vector<6x128xf32>
    %c2_40 = arith.constant 2 : index
    %c0_41 = arith.constant 0 : index
    %c0_42 = arith.constant 0 : index
    %90 = vector.load %arg4[%c2_40, %c0_41, %c0_42] : memref<4x1x128xf32, #tpu.memory_space<vmem>>, vector<1x1x128xf32>
    %91 = vector.shape_cast %90 : vector<1x1x128xf32> to vector<1x128xf32>
    %92 = vector.broadcast %91 : vector<1x128xf32> to vector<6x128xf32>
    %93 = arith.addf %89, %92 : vector<6x128xf32>
    %c2_43 = arith.constant 2 : index
    %c0_44 = arith.constant 0 : index
    %c0_45 = arith.constant 0 : index
    %94 = vector.load %arg3[%c2_43, %c0_44, %c0_45] : memref<4x128x128xbf16, #tpu.memory_space<vmem>>, vector<1x128x128xbf16>
    %95 = vector.shape_cast %94 : vector<1x128x128xbf16> to vector<128x128xbf16>
    %c2_46 = arith.constant 2 : index
    %c0_47 = arith.constant 0 : index
    %c0_48 = arith.constant 0 : index
    %96 = vector.load %arg1[%c2_46, %c0_47, %c0_48] : memref<4x1x128xf32, #tpu.memory_space<vmem>>, vector<1x1x128xf32>
    %97 = vector.shape_cast %96 : vector<1x1x128xf32> to vector<1x128xf32>
    %98 = arith.truncf %97 : vector<1x128xf32> to vector<1x128xbf16>
    %99 = vector.extract_strided_slice %93 {offsets = [0, 0], sizes = [1, 128], strides = [1, 1]} : vector<6x128xf32> to vector<1x128xf32>
    %cst_49 = arith.constant dense<0.000000e+00> : vector<1x128xf32>
    %100 = tpu.matmul %98, %95, %cst_49 {dimension_numbers = #tpu.dot_dimension_numbers<[1], [0], [0], [1], [0, 0, 1, 1], [], []>} : vector<1x128xbf16>, vector<128x128xbf16>, vector<1x128xf32> -> vector<1x128xf32>
    %101 = arith.addf %99, %100 : vector<1x128xf32>
    %102 = math.tanh %101 : vector<1x128xf32>
    %103 = arith.truncf %102 : vector<1x128xf32> to vector<1x128xbf16>
    %104 = vector.extract_strided_slice %93 {offsets = [1, 0], sizes = [1, 128], strides = [1, 1]} : vector<6x128xf32> to vector<1x128xf32>
    %cst_50 = arith.constant dense<0.000000e+00> : vector<1x128xf32>
    %105 = tpu.matmul %103, %95, %cst_50 {dimension_numbers = #tpu.dot_dimension_numbers<[1], [0], [0], [1], [0, 0, 1, 1], [], []>} : vector<1x128xbf16>, vector<128x128xbf16>, vector<1x128xf32> -> vector<1x128xf32>
    %106 = arith.addf %104, %105 : vector<1x128xf32>
    %107 = math.tanh %106 : vector<1x128xf32>
    %108 = arith.truncf %107 : vector<1x128xf32> to vector<1x128xbf16>
    %109 = vector.extract_strided_slice %93 {offsets = [2, 0], sizes = [1, 128], strides = [1, 1]} : vector<6x128xf32> to vector<1x128xf32>
    %cst_51 = arith.constant dense<0.000000e+00> : vector<1x128xf32>
    %110 = tpu.matmul %108, %95, %cst_51 {dimension_numbers = #tpu.dot_dimension_numbers<[1], [0], [0], [1], [0, 0, 1, 1], [], []>} : vector<1x128xbf16>, vector<128x128xbf16>, vector<1x128xf32> -> vector<1x128xf32>
    %111 = arith.addf %109, %110 : vector<1x128xf32>
    %112 = math.tanh %111 : vector<1x128xf32>
    %113 = arith.truncf %112 : vector<1x128xf32> to vector<1x128xbf16>
    %114 = vector.extract_strided_slice %93 {offsets = [3, 0], sizes = [1, 128], strides = [1, 1]} : vector<6x128xf32> to vector<1x128xf32>
    %cst_52 = arith.constant dense<0.000000e+00> : vector<1x128xf32>
    %115 = tpu.matmul %113, %95, %cst_52 {dimension_numbers = #tpu.dot_dimension_numbers<[1], [0], [0], [1], [0, 0, 1, 1], [], []>} : vector<1x128xbf16>, vector<128x128xbf16>, vector<1x128xf32> -> vector<1x128xf32>
    %116 = arith.addf %114, %115 : vector<1x128xf32>
    %117 = math.tanh %116 : vector<1x128xf32>
    %118 = arith.truncf %117 : vector<1x128xf32> to vector<1x128xbf16>
    %119 = vector.extract_strided_slice %93 {offsets = [4, 0], sizes = [1, 128], strides = [1, 1]} : vector<6x128xf32> to vector<1x128xf32>
    %cst_53 = arith.constant dense<0.000000e+00> : vector<1x128xf32>
    %120 = tpu.matmul %118, %95, %cst_53 {dimension_numbers = #tpu.dot_dimension_numbers<[1], [0], [0], [1], [0, 0, 1, 1], [], []>} : vector<1x128xbf16>, vector<128x128xbf16>, vector<1x128xf32> -> vector<1x128xf32>
    %121 = arith.addf %119, %120 : vector<1x128xf32>
    %122 = math.tanh %121 : vector<1x128xf32>
    %123 = arith.truncf %122 : vector<1x128xf32> to vector<1x128xbf16>
    %124 = vector.extract_strided_slice %93 {offsets = [5, 0], sizes = [1, 128], strides = [1, 1]} : vector<6x128xf32> to vector<1x128xf32>
    %cst_54 = arith.constant dense<0.000000e+00> : vector<1x128xf32>
    %125 = tpu.matmul %123, %95, %cst_54 {dimension_numbers = #tpu.dot_dimension_numbers<[1], [0], [0], [1], [0, 0, 1, 1], [], []>} : vector<1x128xbf16>, vector<128x128xbf16>, vector<1x128xf32> -> vector<1x128xf32>
    %126 = arith.addf %124, %125 : vector<1x128xf32>
    %127 = math.tanh %126 : vector<1x128xf32>
    %128 = arith.truncf %127 : vector<1x128xf32> to vector<1x128xbf16>
    %129 = tpu.concatenate %103, %108, %113, %118, %123, %128 in 0 : vector<1x128xbf16>, vector<1x128xbf16>, vector<1x128xbf16>, vector<1x128xbf16>, vector<1x128xbf16>, vector<1x128xbf16> -> vector<6x128xbf16>
    %c3 = arith.constant 3 : index
    %c0_55 = arith.constant 0 : index
    %c0_56 = arith.constant 0 : index
    %130 = vector.load %arg2[%c3, %c0_55, %c0_56] : memref<4x128x128xbf16, #tpu.memory_space<vmem>>, vector<1x128x128xbf16>
    %131 = vector.shape_cast %130 : vector<1x128x128xbf16> to vector<128x128xbf16>
    %cst_57 = arith.constant dense<0.000000e+00> : vector<6x128xf32>
    %132 = tpu.matmul %129, %131, %cst_57 {dimension_numbers = #tpu.dot_dimension_numbers<[1], [0], [0], [1], [0, 0, 1, 1], [], []>} : vector<6x128xbf16>, vector<128x128xbf16>, vector<6x128xf32> -> vector<6x128xf32>
    %c3_58 = arith.constant 3 : index
    %c0_59 = arith.constant 0 : index
    %c0_60 = arith.constant 0 : index
    %133 = vector.load %arg4[%c3_58, %c0_59, %c0_60] : memref<4x1x128xf32, #tpu.memory_space<vmem>>, vector<1x1x128xf32>
    %134 = vector.shape_cast %133 : vector<1x1x128xf32> to vector<1x128xf32>
    %135 = vector.broadcast %134 : vector<1x128xf32> to vector<6x128xf32>
    %136 = arith.addf %132, %135 : vector<6x128xf32>
    %c3_61 = arith.constant 3 : index
    %c0_62 = arith.constant 0 : index
    %c0_63 = arith.constant 0 : index
    %137 = vector.load %arg3[%c3_61, %c0_62, %c0_63] : memref<4x128x128xbf16, #tpu.memory_space<vmem>>, vector<1x128x128xbf16>
    %138 = vector.shape_cast %137 : vector<1x128x128xbf16> to vector<128x128xbf16>
    %c3_64 = arith.constant 3 : index
    %c0_65 = arith.constant 0 : index
    %c0_66 = arith.constant 0 : index
    %139 = vector.load %arg1[%c3_64, %c0_65, %c0_66] : memref<4x1x128xf32, #tpu.memory_space<vmem>>, vector<1x1x128xf32>
    %140 = vector.shape_cast %139 : vector<1x1x128xf32> to vector<1x128xf32>
    %141 = arith.truncf %140 : vector<1x128xf32> to vector<1x128xbf16>
    %142 = vector.extract_strided_slice %136 {offsets = [0, 0], sizes = [1, 128], strides = [1, 1]} : vector<6x128xf32> to vector<1x128xf32>
    %cst_67 = arith.constant dense<0.000000e+00> : vector<1x128xf32>
    %143 = tpu.matmul %141, %138, %cst_67 {dimension_numbers = #tpu.dot_dimension_numbers<[1], [0], [0], [1], [0, 0, 1, 1], [], []>} : vector<1x128xbf16>, vector<128x128xbf16>, vector<1x128xf32> -> vector<1x128xf32>
    %144 = arith.addf %142, %143 : vector<1x128xf32>
    %145 = math.tanh %144 : vector<1x128xf32>
    %146 = arith.truncf %145 : vector<1x128xf32> to vector<1x128xbf16>
    %147 = vector.extract_strided_slice %136 {offsets = [1, 0], sizes = [1, 128], strides = [1, 1]} : vector<6x128xf32> to vector<1x128xf32>
    %cst_68 = arith.constant dense<0.000000e+00> : vector<1x128xf32>
    %148 = tpu.matmul %146, %138, %cst_68 {dimension_numbers = #tpu.dot_dimension_numbers<[1], [0], [0], [1], [0, 0, 1, 1], [], []>} : vector<1x128xbf16>, vector<128x128xbf16>, vector<1x128xf32> -> vector<1x128xf32>
    %149 = arith.addf %147, %148 : vector<1x128xf32>
    %150 = math.tanh %149 : vector<1x128xf32>
    %151 = arith.truncf %150 : vector<1x128xf32> to vector<1x128xbf16>
    %152 = vector.extract_strided_slice %136 {offsets = [2, 0], sizes = [1, 128], strides = [1, 1]} : vector<6x128xf32> to vector<1x128xf32>
    %cst_69 = arith.constant dense<0.000000e+00> : vector<1x128xf32>
    %153 = tpu.matmul %151, %138, %cst_69 {dimension_numbers = #tpu.dot_dimension_numbers<[1], [0], [0], [1], [0, 0, 1, 1], [], []>} : vector<1x128xbf16>, vector<128x128xbf16>, vector<1x128xf32> -> vector<1x128xf32>
    %154 = arith.addf %152, %153 : vector<1x128xf32>
    %155 = math.tanh %154 : vector<1x128xf32>
    %156 = arith.truncf %155 : vector<1x128xf32> to vector<1x128xbf16>
    %157 = vector.extract_strided_slice %136 {offsets = [3, 0], sizes = [1, 128], strides = [1, 1]} : vector<6x128xf32> to vector<1x128xf32>
    %cst_70 = arith.constant dense<0.000000e+00> : vector<1x128xf32>
    %158 = tpu.matmul %156, %138, %cst_70 {dimension_numbers = #tpu.dot_dimension_numbers<[1], [0], [0], [1], [0, 0, 1, 1], [], []>} : vector<1x128xbf16>, vector<128x128xbf16>, vector<1x128xf32> -> vector<1x128xf32>
    %159 = arith.addf %157, %158 : vector<1x128xf32>
    %160 = math.tanh %159 : vector<1x128xf32>
    %161 = arith.truncf %160 : vector<1x128xf32> to vector<1x128xbf16>
    %162 = vector.extract_strided_slice %136 {offsets = [4, 0], sizes = [1, 128], strides = [1, 1]} : vector<6x128xf32> to vector<1x128xf32>
    %cst_71 = arith.constant dense<0.000000e+00> : vector<1x128xf32>
    %163 = tpu.matmul %161, %138, %cst_71 {dimension_numbers = #tpu.dot_dimension_numbers<[1], [0], [0], [1], [0, 0, 1, 1], [], []>} : vector<1x128xbf16>, vector<128x128xbf16>, vector<1x128xf32> -> vector<1x128xf32>
    %164 = arith.addf %162, %163 : vector<1x128xf32>
    %165 = math.tanh %164 : vector<1x128xf32>
    %166 = arith.truncf %165 : vector<1x128xf32> to vector<1x128xbf16>
    %167 = vector.extract_strided_slice %136 {offsets = [5, 0], sizes = [1, 128], strides = [1, 1]} : vector<6x128xf32> to vector<1x128xf32>
    %cst_72 = arith.constant dense<0.000000e+00> : vector<1x128xf32>
    %168 = tpu.matmul %166, %138, %cst_72 {dimension_numbers = #tpu.dot_dimension_numbers<[1], [0], [0], [1], [0, 0, 1, 1], [], []>} : vector<1x128xbf16>, vector<128x128xbf16>, vector<1x128xf32> -> vector<1x128xf32>
    %169 = arith.addf %167, %168 : vector<1x128xf32>
    %170 = math.tanh %169 : vector<1x128xf32>
    %171 = arith.truncf %170 : vector<1x128xf32> to vector<1x128xbf16>
    %172 = tpu.concatenate %146, %151, %156, %161, %166, %171 in 0 : vector<1x128xbf16>, vector<1x128xbf16>, vector<1x128xbf16>, vector<1x128xbf16>, vector<1x128xbf16>, vector<1x128xbf16> -> vector<6x128xbf16>
    %c0_73 = arith.constant 0 : index
    %c0_74 = arith.constant 0 : index
    %173 = vector.load %arg5[%c0_73, %c0_74] : memref<128x128xbf16, #tpu.memory_space<vmem>>, vector<128x128xbf16>
    %cst_75 = arith.constant dense<0.000000e+00> : vector<6x128xf32>
    %174 = tpu.matmul %172, %173, %cst_75 {dimension_numbers = #tpu.dot_dimension_numbers<[1], [0], [0], [1], [0, 0, 1, 1], [], []>} : vector<6x128xbf16>, vector<128x128xbf16>, vector<6x128xf32> -> vector<6x128xf32>
    %c0_76 = arith.constant 0 : index
    %c0_77 = arith.constant 0 : index
    %175 = vector.load %arg6[%c0_76, %c0_77] : memref<1x128xf32, #tpu.memory_space<vmem>>, vector<1x128xf32>
    %176 = vector.broadcast %175 : vector<1x128xf32> to vector<6x128xf32>
    %177 = arith.addf %174, %176 : vector<6x128xf32>
    %cst_78 = arith.constant dense<0xFF800000> : vector<6xf32>
    %178 = vector.multi_reduction <maximumf>, %177, %cst_78 [1] : vector<6x128xf32> to vector<6xf32>
    %179 = vector.shape_cast %178 : vector<6xf32> to vector<6x1xf32>
    %180 = vector.broadcast %179 : vector<6x1xf32> to vector<6x128xf32>
    %181 = arith.subf %177, %180 : vector<6x128xf32>
    %182 = math.exp %181 : vector<6x128xf32>
    %cst_79 = arith.constant dense<0.000000e+00> : vector<6xf32>
    %183 = vector.multi_reduction <add>, %182, %cst_79 [1] : vector<6x128xf32> to vector<6xf32>
    %184 = vector.shape_cast %183 : vector<6xf32> to vector<6x1xf32>
    %185 = vector.broadcast %184 : vector<6x1xf32> to vector<6x128xf32>
    %186 = arith.divf %182, %185 : vector<6x128xf32>
    %c0_80 = arith.constant 0 : index
    %c0_81 = arith.constant 0 : index
    %187 = vector.load %arg7[%c0_80, %c0_81] : memref<6x128xf32, #tpu.memory_space<vmem>>, vector<6x128xf32>
    tpu.vector_store %arg7[%c0_80, %c0_81], %186 {strides = array<i32>} : memref<6x128xf32, #tpu.memory_space<vmem>>, vector<6x128xf32>,
    return
  }
}

</mosaic_0001>

<llo_original>
// kernel: rnn_forward.1
$region0: #{rnn_forward.1}
  #allocation0 [shape = 'u32[]', space=smem, size = 0x4, offset = 0x4, fixed_abs, tag = 'smem constant byte address 0x4 - core index']
  #allocation1 [shape = 'u32[144,128]{1,0:T(1,128)}', space=vmem, size = 0x12000, scoped, tag = 'internal scratch']
  %s0 = inlined_call_operand.vmem [shape: bf16[6,128], index: 0, kind: input, shape index: {}]
  %s1 = inlined_call_operand.vmem [shape: f32[4,1,128], index: 1, kind: input, shape index: {}]
  %s2 = inlined_call_operand.hbm [shape: bf16[4,128,128], index: 2, kind: input, shape index: {}]
  %s3 = inlined_call_operand.hbm [shape: bf16[4,128,128], index: 3, kind: input, shape index: {}]
  %s4 = inlined_call_operand.vmem [shape: f32[4,1,128], index: 4, kind: input, shape index: {}]
  %s5 = inlined_call_operand.vmem [shape: bf16[128,128], index: 5, kind: input, shape index: {}]
  %s6 = inlined_call_operand.vmem [shape: f32[1,128], index: 6, kind: input, shape index: {}]
  %s7 = inlined_call_operand.vmem [shape: f32[6,128], index: 7, kind: output, shape index: {}]
  %s8 = sld [smem:[#allocation0]]
  $region46: #{rnn_forward.1} parent=0
    _
  %s10 = ssub.s32 1, %s8
  %s11 = scalar_select 0, %s10, %s8
  $region1: #{rnn_forward.1} parent=0
    #allocation2 [shape = 'u8[131072]{0}', space=vmem, size = 0x20000, scoped, tag = 'input window, operand 2, single buffered']
    #allocation3 [shape = 's32[1]{0}', space=sflag, size = 0x4, scoped, tag = 'scoped memory for rnn_forward.1']
    #allocation4 [shape = 'u8[131072]{0}', space=vmem, size = 0x20000, scoped, tag = 'input window, operand 3, single buffered']
    #allocation5 [shape = 's32[1]{0}', space=sflag, size = 0x4, scoped, tag = 'scoped memory for rnn_forward.1']
    %12 = vsyncpa [#allocation3], 0
    %13 = vsyncpa [#allocation5], 0
    // Predicated region
    $region2: #{rnn_forward.1} parent=1 // pred_check
      _
    $region3: #{rnn_forward.1} parent=1 // pred_check_branch
      %15 = sbr.rel (0) target = $region5
    $region4: #{rnn_forward.1} parent=1 // pred_region
      _
    $region5: #{rnn_forward.1} parent=1 // pred_fallthru
      _
    // Predicated region
    $region6: #{rnn_forward.1} parent=1 // pred_check
      _
    $region7: #{rnn_forward.1} parent=1 // pred_check_branch
      %17 = sbr.rel (0) target = $region9
    $region8: #{rnn_forward.1} parent=1 // pred_region
      _
    $region9: #{rnn_forward.1} parent=1 // pred_fallthru
      _
    // Predicated region
    $region10: #{rnn_forward.1} parent=1 // pred_check
      _
    $region11: #{rnn_forward.1} parent=1 // pred_check_branch
      %19 = sbr.rel (0) target = $region13
    $region12: #{rnn_forward.1} parent=1 // pred_region
      %s21 = ssub.s32 4096, 4096
      %22 = vsyncadd [#allocation3], %s21
      %s23 = sshll.u32 [#allocation2], 4
      %s24 = int_to_ptr.vmem [resolvable:$true] %s23
      %29 = dma.hbm_to_vmem [thread:$0]  %s2, 4096, %s24, [#allocation3], 64, 64, 4
    $region13: #{rnn_forward.1} parent=1 // pred_fallthru
      _
    // Predicated region
    $region14: #{rnn_forward.1} parent=1 // pred_check
      _
    $region15: #{rnn_forward.1} parent=1 // pred_check_branch
      %31 = sbr.rel (0) target = $region17
    $region16: #{rnn_forward.1} parent=1 // pred_region
      %s33 = ssub.s32 4096, 4096
      %34 = vsyncadd [#allocation5], %s33
      %s35 = sshll.u32 [#allocation4], 4
      %s36 = int_to_ptr.vmem [resolvable:$true] %s35
      %41 = dma.hbm_to_vmem [thread:$0]  %s3, 4096, %s36, [#allocation5], 64, 64, 4
    $region17: #{rnn_forward.1} parent=1 // pred_fallthru
      _
    // Predicated region
    $region18: #{rnn_forward.1} parent=1 // pred_check
      _
    $region19: #{rnn_forward.1} parent=1 // pred_check_branch
      %43 = sbr.rel (0) target = $region21
    $region20: #{rnn_forward.1} parent=1 // pred_region
      _
    $region21: #{rnn_forward.1} parent=1 // pred_fallthru
      _
    // Predicated region
    $region22: #{rnn_forward.1} parent=1 // pred_check
      _
    $region23: #{rnn_forward.1} parent=1 // pred_check_branch
      %45 = sbr.rel (0) target = $region25
    $region24: #{rnn_forward.1} parent=1 // pred_region
      _
    $region25: #{rnn_forward.1} parent=1 // pred_fallthru
      _
    // Predicated region
    $region26: #{rnn_forward.1} parent=1 // pred_check
      _
    $region27: #{rnn_forward.1} parent=1 // pred_check_branch
      %47 = sbr.rel (0) target = $region29
    $region28: #{rnn_forward.1} parent=1 // pred_region
      _
    $region29: #{rnn_forward.1} parent=1 // pred_fallthru
      _
    // Predicated region
    $region30: #{rnn_forward.1} parent=1 // pred_check
      _
    $region31: #{rnn_forward.1} parent=1 // pred_check_branch
      %49 = sbr.rel (0) target = $region33
    $region32: #{rnn_forward.1} parent=1 // pred_region
      %50 = dma.done [#allocation3], 4096
    $region33: #{rnn_forward.1} parent=1 // pred_fallthru
      _
    // Predicated region
    $region34: #{rnn_forward.1} parent=1 // pred_check
      _
    $region35: #{rnn_forward.1} parent=1 // pred_check_branch
      %52 = sbr.rel (0) target = $region37
    $region36: #{rnn_forward.1} parent=1 // pred_region
      %53 = dma.done [#allocation5], 4096
    $region37: #{rnn_forward.1} parent=1 // pred_fallthru
      _
    %v55 = vld [vmem:[%s0] sm:$0x7]
    %v56 = vld [vmem:[#allocation2] sm:$0xf]
    %v57 = vld [vmem:[#allocation2 + $0x4] sm:$0xf]
    %v58 = vld [vmem:[#allocation2 + $0x8] sm:$0xf]
    %v59 = vld [vmem:[#allocation2 + $0xc] sm:$0xf]
    %v60 = vld [vmem:[#allocation2 + $0x10] sm:$0xf]
    %v61 = vld [vmem:[#allocation2 + $0x14] sm:$0xf]
    %v62 = vld [vmem:[#allocation2 + $0x18] sm:$0xf]
    %v63 = vld [vmem:[#allocation2 + $0x1c] sm:$0xf]
    %v64 = vld [vmem:[#allocation2 + $0x20] sm:$0xf]
    %v65 = vld [vmem:[#allocation2 + $0x24] sm:$0xf]
    %v66 = vld [vmem:[#allocation2 + $0x28] sm:$0xf]
    %v67 = vld [vmem:[#allocation2 + $0x2c] sm:$0xf]
    %v68 = vld [vmem:[#allocation2 + $0x30] sm:$0xf]
    %v69 = vld [vmem:[#allocation2 + $0x34] sm:$0xf]
    %v70 = vld [vmem:[#allocation2 + $0x38] sm:$0xf]
    %v71 = vld [vmem:[#allocation2 + $0x3c] sm:$0xf]
    %v72 = vld [vmem:[%s4] sm:$0x1]
    %v74 = vlaneseq
    %v75 = vshrl.u32 %v74, 7
    %v76 = vsub.s32 0, %v75
    %v77 = vrot.slane %v72, %v76
    %v95 = vunpack.c.l.b16 %v56
    %v96 = vunpack.c.l.b16 %v57
    %v97 = vunpack.c.l.b16 %v58
    %v98 = vunpack.c.l.b16 %v59
    %v99 = vunpack.c.l.b16 %v60
    %v100 = vunpack.c.l.b16 %v61
    %v101 = vunpack.c.l.b16 %v62
    %v102 = vunpack.c.l.b16 %v63
    %v103 = vunpack.c.l.b16 %v64
    %v104 = vunpack.c.l.b16 %v65
    %v105 = vunpack.c.l.b16 %v66
    %v106 = vunpack.c.l.b16 %v67
    %v107 = vunpack.c.l.b16 %v68
    %v108 = vunpack.c.l.b16 %v69
    %v109 = vunpack.c.l.b16 %v70
    %v110 = vunpack.c.l.b16 %v71
    %v111 = vpack.c.b16 %v96, %v95
    %v112 = vpack.c.b16 %v98, %v97
    %v113 = vpack.c.b16 %v100, %v99
    %v114 = vpack.c.b16 %v102, %v101
    %v115 = vpack.c.b16 %v104, %v103
    %v116 = vpack.c.b16 %v106, %v105
    %v117 = vpack.c.b16 %v108, %v107
    %v118 = vpack.c.b16 %v110, %v109
    %127 = vmatprep.subr.bf16.mxu0 0
    %128 = vmatpush1.bf16.msra.mxu0 %v111
    %129 = vmatprep.subr.bf16.mxu0 0
    %130 = vmatpush1.bf16.msra.mxu0 %v112
    %131 = vmatprep.subr.bf16.mxu0 0
    %132 = vmatpush1.bf16.msra.mxu0 %v113
    %133 = vmatprep.subr.bf16.mxu0 0
    %134 = vmatpush1.bf16.msra.mxu0 %v114
    %135 = vmatprep.subr.bf16.mxu0 0
    %136 = vmatpush1.bf16.msra.mxu0 %v115
    %137 = vmatprep.subr.bf16.mxu0 0
    %138 = vmatpush1.bf16.msra.mxu0 %v116
    %139 = vmatprep.subr.bf16.mxu0 0
    %140 = vmatpush1.bf16.msra.mxu0 %v117
    %141 = vmatprep.subr.bf16.mxu0 0
    %142 = vmatpush1.bf16.msra.mxu0 %v118
    %143 = vmatprep.subr.bf16.mxu0 0
    %144 = vmatpush1.bf16.msra.mxu0 0
    %145 = vmatprep.subr.bf16.mxu0 0
    %146 = vmatpush1.bf16.msra.mxu0 0
    %147 = vmatprep.subr.bf16.mxu0 0
    %148 = vmatpush1.bf16.msra.mxu0 0
    %149 = vmatprep.subr.bf16.mxu0 0
    %150 = vmatpush1.bf16.msra.mxu0 0
    %151 = vmatprep.subr.bf16.mxu0 0
    %152 = vmatpush1.bf16.msra.mxu0 0
    %153 = vmatprep.subr.bf16.mxu0 0
    %154 = vmatpush1.bf16.msra.mxu0 0
    %155 = vmatprep.subr.bf16.mxu0 0
    %156 = vmatpush1.bf16.msra.mxu0 0
    %157 = vmatprep.subr.bf16.mxu0 0
    %158 = vmatpush1.bf16.msra.mxu0 0
    %159 = vmatprep.mubr.bf16.mxu0 0
    %160 = vmatmul.mubr.bf16.gmra.mrb[0].mxu0 %v55
    %v161 = vpop.f32.mrb[0].mxu0
    %v162 = vadd.f32 %v77, %v161
    %v163 = vpop.f32.mrb[0].mxu0
    %v164 = vpop.f32.mrb[0].mxu0
    %v165 = vpop.f32.mrb[0].mxu0
    %166 = vdwg.mxu0
    %v167 = vld [vmem:[#allocation4] sm:$0xf]
    %v168 = vld [vmem:[#allocation4 + $0x4] sm:$0xf]
    %v169 = vld [vmem:[#allocation4 + $0x8] sm:$0xf]
    %v170 = vld [vmem:[#allocation4 + $0xc] sm:$0xf]
    %v171 = vld [vmem:[#allocation4 + $0x10] sm:$0xf]
    %v172 = vld [vmem:[#allocation4 + $0x14] sm:$0xf]
    %v173 = vld [vmem:[#allocation4 + $0x18] sm:$0xf]
    %v174 = vld [vmem:[#allocation4 + $0x1c] sm:$0xf]
    %v175 = vld [vmem:[#allocation4 + $0x20] sm:$0xf]
    %v176 = vld [vmem:[#allocation4 + $0x24] sm:$0xf]
    %v177 = vld [vmem:[#allocation4 + $0x28] sm:$0xf]
    %v178 = vld [vmem:[#allocation4 + $0x2c] sm:$0xf]
    %v179 = vld [vmem:[#allocation4 + $0x30] sm:$0xf]
    %v180 = vld [vmem:[#allocation4 + $0x34] sm:$0xf]
    %v181 = vld [vmem:[#allocation4 + $0x38] sm:$0xf]
    %v182 = vld [vmem:[#allocation4 + $0x3c] sm:$0xf]
    %v183 = vld [vmem:[%s1] sm:$0x1]
    %v184 = vpack.c.bf16 %v183, %v183
    %v201 = vunpack.c.l.b16 %v167
    %v202 = vunpack.c.l.b16 %v168
    %v203 = vunpack.c.l.b16 %v169
    %v204 = vunpack.c.l.b16 %v170
    %v205 = vunpack.c.l.b16 %v171
    %v206 = vunpack.c.l.b16 %v172
    %v207 = vunpack.c.l.b16 %v173
    %v208 = vunpack.c.l.b16 %v174
    %v209 = vunpack.c.l.b16 %v175
    %v210 = vunpack.c.l.b16 %v176
    %v211 = vunpack.c.l.b16 %v177
    %v212 = vunpack.c.l.b16 %v178
    %v213 = vunpack.c.l.b16 %v179
    %v214 = vunpack.c.l.b16 %v180
    %v215 = vunpack.c.l.b16 %v181
    %v216 = vunpack.c.l.b16 %v182
    %v217 = vpack.c.b16 %v202, %v201
    %v218 = vpack.c.b16 %v204, %v203
    %v219 = vpack.c.b16 %v206, %v205
    %v220 = vpack.c.b16 %v208, %v207
    %v221 = vpack.c.b16 %v210, %v209
    %v222 = vpack.c.b16 %v212, %v211
    %v223 = vpack.c.b16 %v214, %v213
    %v224 = vpack.c.b16 %v216, %v215
    %233 = vmatprep.subr.bf16.mxu0 0
    %234 = vmatpush1.bf16.msra.mxu0 %v217
    %235 = vmatprep.subr.bf16.mxu0 0
    %236 = vmatpush1.bf16.msra.mxu0 %v218
    %237 = vmatprep.subr.bf16.mxu0 0
    %238 = vmatpush1.bf16.msra.mxu0 %v219
    %239 = vmatprep.subr.bf16.mxu0 0
    %240 = vmatpush1.bf16.msra.mxu0 %v220
    %241 = vmatprep.subr.bf16.mxu0 0
    %242 = vmatpush1.bf16.msra.mxu0 %v221
    %243 = vmatprep.subr.bf16.mxu0 0
    %244 = vmatpush1.bf16.msra.mxu0 %v222
    %245 = vmatprep.subr.bf16.mxu0 0
    %246 = vmatpush1.bf16.msra.mxu0 %v223
    %247 = vmatprep.subr.bf16.mxu0 0
    %248 = vmatpush1.bf16.msra.mxu0 %v224
    %249 = vmatprep.subr.bf16.mxu0 0
    %250 = vmatpush1.bf16.msra.mxu0 0
    %251 = vmatprep.subr.bf16.mxu0 0
    %252 = vmatpush1.bf16.msra.mxu0 0
    %253 = vmatprep.subr.bf16.mxu0 0
    %254 = vmatpush1.bf16.msra.mxu0 0
    %255 = vmatprep.subr.bf16.mxu0 0
    %256 = vmatpush1.bf16.msra.mxu0 0
    %257 = vmatprep.subr.bf16.mxu0 0
    %258 = vmatpush1.bf16.msra.mxu0 0
    %259 = vmatprep.subr.bf16.mxu0 0
    %260 = vmatpush1.bf16.msra.mxu0 0
    %261 = vmatprep.subr.bf16.mxu0 0
    %262 = vmatpush1.bf16.msra.mxu0 0
    %263 = vmatprep.subr.bf16.mxu0 0
    %264 = vmatpush1.bf16.msra.mxu0 0
    %265 = vmatprep.mubr.bf16.mxu0 0
    %266 = vmatmul.mubr.bf16.gmra.mrb[0].mxu0 %v184
    %v267 = vpop.f32.mrb[0].mxu0
    %v268 = vadd.f32 0.0, %v267
    %v269 = vpop.f32.mrb[0].mxu0
    %v270 = vpop.f32.mrb[0].mxu0
    %v271 = vpop.f32.mrb[0].mxu0
    %272 = vdwg.mxu0
    %v273 = vadd.f32 %v162, %v268
    %v274 = vtanh.pop %v273
    %v275 = vpack.c.bf16 %v274, %v274
    %276 = vmatprep.subr.bf16.mxu0 0
    %277 = vmatpush1.bf16.msra.mxu0 %v217
    %278 = vmatprep.subr.bf16.mxu0 0
    %279 = vmatpush1.bf16.msra.mxu0 %v218
    %280 = vmatprep.subr.bf16.mxu0 0
    %281 = vmatpush1.bf16.msra.mxu0 %v219
    %282 = vmatprep.subr.bf16.mxu0 0
    %283 = vmatpush1.bf16.msra.mxu0 %v220
    %284 = vmatprep.subr.bf16.mxu0 0
    %285 = vmatpush1.bf16.msra.mxu0 %v221
    %286 = vmatprep.subr.bf16.mxu0 0
    %287 = vmatpush1.bf16.msra.mxu0 %v222
    %288 = vmatprep.subr.bf16.mxu0 0
    %289 = vmatpush1.bf16.msra.mxu0 %v223
    %290 = vmatprep.subr.bf16.mxu0 0
    %291 = vmatpush1.bf16.msra.mxu0 %v224
    %292 = vmatprep.subr.bf16.mxu0 0
    %293 = vmatpush1.bf16.msra.mxu0 0
    %294 = vmatprep.subr.bf16.mxu0 0
    %295 = vmatpush1.bf16.msra.mxu0 0
    %296 = vmatprep.subr.bf16.mxu0 0
    %297 = vmatpush1.bf16.msra.mxu0 0
    %298 = vmatprep.subr.bf16.mxu0 0
    %299 = vmatpush1.bf16.msra.mxu0 0
    %300 = vmatprep.subr.bf16.mxu0 0
    %301 = vmatpush1.bf16.msra.mxu0 0
    %302 = vmatprep.subr.bf16.mxu0 0
    %303 = vmatpush1.bf16.msra.mxu0 0
    %304 = vmatprep.subr.bf16.mxu0 0
    %305 = vmatpush1.bf16.msra.mxu0 0
    %306 = vmatprep.subr.bf16.mxu0 0
    %307 = vmatpush1.bf16.msra.mxu0 0
    %308 = vmatprep.mubr.bf16.mxu0 0
    %309 = vmatmul.mubr.bf16.gmra.mrb[0].mxu0 %v275
    %v310 = vpop.f32.mrb[0].mxu0
    %v311 = vadd.f32 0.0, %v310
    %v312 = vpop.f32.mrb[0].mxu0
    %v313 = vpop.f32.mrb[0].mxu0
    %v314 = vpop.f32.mrb[0].mxu0
    %315 = vdwg.mxu0
    %v317 = vrot.slane %v311, 7
    %v319 = vadd.f32 %v162, %v317
    %v320 = vtanh.pop %v319
    %v321 = vpack.c.bf16 %v320, %v320
    %v323 = vshrl.u32 %v321, 16
    %326 = vmatprep.subr.bf16.mxu0 0
    %327 = vmatpush1.bf16.msra.mxu0 %v217
    %328 = vmatprep.subr.bf16.mxu0 0
    %329 = vmatpush1.bf16.msra.mxu0 %v218
    %330 = vmatprep.subr.bf16.mxu0 0
    %331 = vmatpush1.bf16.msra.mxu0 %v219
    %332 = vmatprep.subr.bf16.mxu0 0
    %333 = vmatpush1.bf16.msra.mxu0 %v220
    %334 = vmatprep.subr.bf16.mxu0 0
    %335 = vmatpush1.bf16.msra.mxu0 %v221
    %336 = vmatprep.subr.bf16.mxu0 0
    %337 = vmatpush1.bf16.msra.mxu0 %v222
    %338 = vmatprep.subr.bf16.mxu0 0
    %339 = vmatpush1.bf16.msra.mxu0 %v223
    %340 = vmatprep.subr.bf16.mxu0 0
    %341 = vmatpush1.bf16.msra.mxu0 %v224
    %342 = vmatprep.subr.bf16.mxu0 0
    %343 = vmatpush1.bf16.msra.mxu0 0
    %344 = vmatprep.subr.bf16.mxu0 0
    %345 = vmatpush1.bf16.msra.mxu0 0
    %346 = vmatprep.subr.bf16.mxu0 0
    %347 = vmatpush1.bf16.msra.mxu0 0
    %348 = vmatprep.subr.bf16.mxu0 0
    %349 = vmatpush1.bf16.msra.mxu0 0
    %350 = vmatprep.subr.bf16.mxu0 0
    %351 = vmatpush1.bf16.msra.mxu0 0
    %352 = vmatprep.subr.bf16.mxu0 0
    %353 = vmatpush1.bf16.msra.mxu0 0
    %354 = vmatprep.subr.bf16.mxu0 0
    %355 = vmatpush1.bf16.msra.mxu0 0
    %356 = vmatprep.subr.bf16.mxu0 0
    %357 = vmatpush1.bf16.msra.mxu0 0
    %358 = vmatprep.mubr.bf16.mxu0 0
    %359 = vmatmul.mubr.bf16.gmra.mrb[0].mxu0 %v323
    %v360 = vpop.f32.mrb[0].mxu0
    %v361 = vadd.f32 0.0, %v360
    %v362 = vpop.f32.mrb[0].mxu0
    %v363 = vpop.f32.mrb[0].mxu0
    %v364 = vpop.f32.mrb[0].mxu0
    %365 = vdwg.mxu0
    %v367 = vrot.slane %v361, 6
    %v369 = vadd.f32 %v162, %v367
    %v370 = vtanh.pop %v369
    %v371 = vpack.c.bf16 %v370, %v370
    %v373 = vrot.slane %v371, 1
    %375 = vmatprep.subr.bf16.mxu0 0
    %376 = vmatpush1.bf16.msra.mxu0 %v217
    %377 = vmatprep.subr.bf16.mxu0 0
    %378 = vmatpush1.bf16.msra.mxu0 %v218
    %379 = vmatprep.subr.bf16.mxu0 0
    %380 = vmatpush1.bf16.msra.mxu0 %v219
    %381 = vmatprep.subr.bf16.mxu0 0
    %382 = vmatpush1.bf16.msra.mxu0 %v220
    %383 = vmatprep.subr.bf16.mxu0 0
    %384 = vmatpush1.bf16.msra.mxu0 %v221
    %385 = vmatprep.subr.bf16.mxu0 0
    %386 = vmatpush1.bf16.msra.mxu0 %v222
    %387 = vmatprep.subr.bf16.mxu0 0
    %388 = vmatpush1.bf16.msra.mxu0 %v223
    %389 = vmatprep.subr.bf16.mxu0 0
    %390 = vmatpush1.bf16.msra.mxu0 %v224
    %391 = vmatprep.subr.bf16.mxu0 0
    %392 = vmatpush1.bf16.msra.mxu0 0
    %393 = vmatprep.subr.bf16.mxu0 0
    %394 = vmatpush1.bf16.msra.mxu0 0
    %395 = vmatprep.subr.bf16.mxu0 0
    %396 = vmatpush1.bf16.msra.mxu0 0
    %397 = vmatprep.subr.bf16.mxu0 0
    %398 = vmatpush1.bf16.msra.mxu0 0
    %399 = vmatprep.subr.bf16.mxu0 0
    %400 = vmatpush1.bf16.msra.mxu0 0
    %401 = vmatprep.subr.bf16.mxu0 0
    %402 = vmatpush1.bf16.msra.mxu0 0
    %403 = vmatprep.subr.bf16.mxu0 0
    %404 = vmatpush1.bf16.msra.mxu0 0
    %405 = vmatprep.subr.bf16.mxu0 0
    %406 = vmatpush1.bf16.msra.mxu0 0
    %407 = vmatprep.mubr.bf16.mxu0 0
    %408 = vmatmul.mubr.bf16.gmra.mrb[0].mxu0 %v373
    %v409 = vpop.f32.mrb[0].mxu0
    %v410 = vadd.f32 0.0, %v409
    %v411 = vpop.f32.mrb[0].mxu0
    %v412 = vpop.f32.mrb[0].mxu0
    %v413 = vpop.f32.mrb[0].mxu0
    %414 = vdwg.mxu0
    %v416 = vrot.slane %v410, 5
    %v418 = vadd.f32 %v162, %v416
    %v419 = vtanh.pop %v418
    %v420 = vpack.c.bf16 %v419, %v419
    %v422 = vshrl.u32 %v420, 16
    %v424 = vrot.slane %v422, 1
    %426 = vmatprep.subr.bf16.mxu0 0
    %427 = vmatpush1.bf16.msra.mxu0 %v217
    %428 = vmatprep.subr.bf16.mxu0 0
    %429 = vmatpush1.bf16.msra.mxu0 %v218
    %430 = vmatprep.subr.bf16.mxu0 0
    %431 = vmatpush1.bf16.msra.mxu0 %v219
    %432 = vmatprep.subr.bf16.mxu0 0
    %433 = vmatpush1.bf16.msra.mxu0 %v220
    %434 = vmatprep.subr.bf16.mxu0 0
    %435 = vmatpush1.bf16.msra.mxu0 %v221
    %436 = vmatprep.subr.bf16.mxu0 0
    %437 = vmatpush1.bf16.msra.mxu0 %v222
    %438 = vmatprep.subr.bf16.mxu0 0
    %439 = vmatpush1.bf16.msra.mxu0 %v223
    %440 = vmatprep.subr.bf16.mxu0 0
    %441 = vmatpush1.bf16.msra.mxu0 %v224
    %442 = vmatprep.subr.bf16.mxu0 0
    %443 = vmatpush1.bf16.msra.mxu0 0
    %444 = vmatprep.subr.bf16.mxu0 0
    %445 = vmatpush1.bf16.msra.mxu0 0
    %446 = vmatprep.subr.bf16.mxu0 0
    %447 = vmatpush1.bf16.msra.mxu0 0
    %448 = vmatprep.subr.bf16.mxu0 0
    %449 = vmatpush1.bf16.msra.mxu0 0
    %450 = vmatprep.subr.bf16.mxu0 0
    %451 = vmatpush1.bf16.msra.mxu0 0
    %452 = vmatprep.subr.bf16.mxu0 0
    %453 = vmatpush1.bf16.msra.mxu0 0
    %454 = vmatprep.subr.bf16.mxu0 0
    %455 = vmatpush1.bf16.msra.mxu0 0
    %456 = vmatprep.subr.bf16.mxu0 0
    %457 = vmatpush1.bf16.msra.mxu0 0
    %458 = vmatprep.mubr.bf16.mxu0 0
    %459 = vmatmul.mubr.bf16.gmra.mrb[0].mxu0 %v424
    %v460 = vpop.f32.mrb[0].mxu0
    %v461 = vadd.f32 0.0, %v460
    %v462 = vpop.f32.mrb[0].mxu0
    %v463 = vpop.f32.mrb[0].mxu0
    %v464 = vpop.f32.mrb[0].mxu0
    %465 = vdwg.mxu0
    %v467 = vrot.slane %v461, 4
    %v469 = vadd.f32 %v162, %v467
    %v470 = vtanh.pop %v469
    %v471 = vpack.c.bf16 %v470, %v470
    %v473 = vrot.slane %v471, 2
    %475 = vmatprep.subr.bf16.mxu0 0
    %476 = vmatpush1.bf16.msra.mxu0 %v217
    %477 = vmatprep.subr.bf16.mxu0 0
    %478 = vmatpush1.bf16.msra.mxu0 %v218
    %479 = vmatprep.subr.bf16.mxu0 0
    %480 = vmatpush1.bf16.msra.mxu0 %v219
    %481 = vmatprep.subr.bf16.mxu0 0
    %482 = vmatpush1.bf16.msra.mxu0 %v220
    %483 = vmatprep.subr.bf16.mxu0 0
    %484 = vmatpush1.bf16.msra.mxu0 %v221
    %485 = vmatprep.subr.bf16.mxu0 0
    %486 = vmatpush1.bf16.msra.mxu0 %v222
    %487 = vmatprep.subr.bf16.mxu0 0
    %488 = vmatpush1.bf16.msra.mxu0 %v223
    %489 = vmatprep.subr.bf16.mxu0 0
    %490 = vmatpush1.bf16.msra.mxu0 %v224
    %491 = vmatprep.subr.bf16.mxu0 0
    %492 = vmatpush1.bf16.msra.mxu0 0
    %493 = vmatprep.subr.bf16.mxu0 0
    %494 = vmatpush1.bf16.msra.mxu0 0
    %495 = vmatprep.subr.bf16.mxu0 0
    %496 = vmatpush1.bf16.msra.mxu0 0
    %497 = vmatprep.subr.bf16.mxu0 0
    %498 = vmatpush1.bf16.msra.mxu0 0
    %499 = vmatprep.subr.bf16.mxu0 0
    %500 = vmatpush1.bf16.msra.mxu0 0
    %501 = vmatprep.subr.bf16.mxu0 0
    %502 = vmatpush1.bf16.msra.mxu0 0
    %503 = vmatprep.subr.bf16.mxu0 0
    %504 = vmatpush1.bf16.msra.mxu0 0
    %505 = vmatprep.subr.bf16.mxu0 0
    %506 = vmatpush1.bf16.msra.mxu0 0
    %507 = vmatprep.mubr.bf16.mxu0 0
    %508 = vmatmul.mubr.bf16.gmra.mrb[0].mxu0 %v473
    %v509 = vpop.f32.mrb[0].mxu0
    %v510 = vadd.f32 0.0, %v509
    %v511 = vpop.f32.mrb[0].mxu0
    %v512 = vpop.f32.mrb[0].mxu0
    %v513 = vpop.f32.mrb[0].mxu0
    %514 = vdwg.mxu0
    %v516 = vrot.slane %v510, 3
    %v518 = vadd.f32 %v162, %v516
    %v519 = vtanh.pop %v518
    %v520 = vpack.c.bf16 %v519, %v519
    %vm521 = vcmask 1040384
    %vm522 = vsmask.f32 256
    %vm523 = vmand %vm521, %vm522
    %v524 = vsel %vm523, %v275, %v321
    %vm525 = vcmask 1040384
    %v528 = vsel %vm525, %v524, %v371
    %vm530 = vcmask 1041408
    %vm531 = vsmask.f32 1280
    %vm532 = vmand %vm530, %vm531
    %v533 = vsel %vm532, %v528, %v420
    %vm534 = vcmask 1041408
    %v537 = vsel %vm534, %v533, %v471
    %vm539 = vcmask 1042432
    %vm540 = vsmask.f32 2304
    %vm541 = vmand %vm539, %vm540
    %v542 = vsel %vm541, %v537, %v520
    %s543 = scalar_lea.vmem [#allocation2], 64
    %v544 = vld [vmem:[%s543] sm:$0xf]
    %v545 = vld [vmem:[%s543 + $0x4] sm:$0xf]
    %v546 = vld [vmem:[%s543 + $0x8] sm:$0xf]
    %v547 = vld [vmem:[%s543 + $0xc] sm:$0xf]
    %v548 = vld [vmem:[%s543 + $0x10] sm:$0xf]
    %v549 = vld [vmem:[%s543 + $0x14] sm:$0xf]
    %v550 = vld [vmem:[%s543 + $0x18] sm:$0xf]
    %v551 = vld [vmem:[%s543 + $0x1c] sm:$0xf]
    %v552 = vld [vmem:[%s543 + $0x20] sm:$0xf]
    %v553 = vld [vmem:[%s543 + $0x24] sm:$0xf]
    %v554 = vld [vmem:[%s543 + $0x28] sm:$0xf]
    %v555 = vld [vmem:[%s543 + $0x2c] sm:$0xf]
    %v556 = vld [vmem:[%s543 + $0x30] sm:$0xf]
    %v557 = vld [vmem:[%s543 + $0x34] sm:$0xf]
    %v558 = vld [vmem:[%s543 + $0x38] sm:$0xf]
    %v559 = vld [vmem:[%s543 + $0x3c] sm:$0xf]
    %s560 = scalar_lea.vmem %s4, 1
    %v561 = vld [vmem:[%s560] sm:$0x1]
    %v563 = vlaneseq
    %v564 = vshrl.u32 %v563, 7
    %v565 = vsub.s32 0, %v564
    %v566 = vrot.slane %v561, %v565
    %v584 = vunpack.c.l.b16 %v544
    %v585 = vunpack.c.l.b16 %v545
    %v586 = vunpack.c.l.b16 %v546
    %v587 = vunpack.c.l.b16 %v547
    %v588 = vunpack.c.l.b16 %v548
    %v589 = vunpack.c.l.b16 %v549
    %v590 = vunpack.c.l.b16 %v550
    %v591 = vunpack.c.l.b16 %v551
    %v592 = vunpack.c.l.b16 %v552
    %v593 = vunpack.c.l.b16 %v553
    %v594 = vunpack.c.l.b16 %v554
    %v595 = vunpack.c.l.b16 %v555
    %v596 = vunpack.c.l.b16 %v556
    %v597 = vunpack.c.l.b16 %v557
    %v598 = vunpack.c.l.b16 %v558
    %v599 = vunpack.c.l.b16 %v559
    %v600 = vpack.c.b16 %v585, %v584
    %v601 = vpack.c.b16 %v587, %v586
    %v602 = vpack.c.b16 %v589, %v588
    %v603 = vpack.c.b16 %v591, %v590
    %v604 = vpack.c.b16 %v593, %v592
    %v605 = vpack.c.b16 %v595, %v594
    %v606 = vpack.c.b16 %v597, %v596
    %v607 = vpack.c.b16 %v599, %v598
    %616 = vmatprep.subr.bf16.mxu0 0
    %617 = vmatpush1.bf16.msra.mxu0 %v600
    %618 = vmatprep.subr.bf16.mxu0 0
    %619 = vmatpush1.bf16.msra.mxu0 %v601
    %620 = vmatprep.subr.bf16.mxu0 0
    %621 = vmatpush1.bf16.msra.mxu0 %v602
    %622 = vmatprep.subr.bf16.mxu0 0
    %623 = vmatpush1.bf16.msra.mxu0 %v603
    %624 = vmatprep.subr.bf16.mxu0 0
    %625 = vmatpush1.bf16.msra.mxu0 %v604
    %626 = vmatprep.subr.bf16.mxu0 0
    %627 = vmatpush1.bf16.msra.mxu0 %v605
    %628 = vmatprep.subr.bf16.mxu0 0
    %629 = vmatpush1.bf16.msra.mxu0 %v606
    %630 = vmatprep.subr.bf16.mxu0 0
    %631 = vmatpush1.bf16.msra.mxu0 %v607
    %632 = vmatprep.subr.bf16.mxu0 0
    %633 = vmatpush1.bf16.msra.mxu0 0
    %634 = vmatprep.subr.bf16.mxu0 0
    %635 = vmatpush1.bf16.msra.mxu0 0
    %636 = vmatprep.subr.bf16.mxu0 0
    %637 = vmatpush1.bf16.msra.mxu0 0
    %638 = vmatprep.subr.bf16.mxu0 0
    %639 = vmatpush1.bf16.msra.mxu0 0
    %640 = vmatprep.subr.bf16.mxu0 0
    %641 = vmatpush1.bf16.msra.mxu0 0
    %642 = vmatprep.subr.bf16.mxu0 0
    %643 = vmatpush1.bf16.msra.mxu0 0
    %644 = vmatprep.subr.bf16.mxu0 0
    %645 = vmatpush1.bf16.msra.mxu0 0
    %646 = vmatprep.subr.bf16.mxu0 0
    %647 = vmatpush1.bf16.msra.mxu0 0
    %648 = vmatprep.mubr.bf16.mxu0 0
    %649 = vmatmul.mubr.bf16.gmra.mrb[0].mxu0 %v542
    %v650 = vpop.f32.mrb[0].mxu0
    %v651 = vadd.f32 %v566, %v650
    %v652 = vpop.f32.mrb[0].mxu0
    %v653 = vpop.f32.mrb[0].mxu0
    %v654 = vpop.f32.mrb[0].mxu0
    %655 = vdwg.mxu0
    %s656 = scalar_lea.vmem [#allocation4], 64
    %v657 = vld [vmem:[%s656] sm:$0xf]
    %v658 = vld [vmem:[%s656 + $0x4] sm:$0xf]
    %v659 = vld [vmem:[%s656 + $0x8] sm:$0xf]
    %v660 = vld [vmem:[%s656 + $0xc] sm:$0xf]
    %v661 = vld [vmem:[%s656 + $0x10] sm:$0xf]
    %v662 = vld [vmem:[%s656 + $0x14] sm:$0xf]
    %v663 = vld [vmem:[%s656 + $0x18] sm:$0xf]
    %v664 = vld [vmem:[%s656 + $0x1c] sm:$0xf]
    %v665 = vld [vmem:[%s656 + $0x20] sm:$0xf]
    %v666 = vld [vmem:[%s656 + $0x24] sm:$0xf]
    %v667 = vld [vmem:[%s656 + $0x28] sm:$0xf]
    %v668 = vld [vmem:[%s656 + $0x2c] sm:$0xf]
    %v669 = vld [vmem:[%s656 + $0x30] sm:$0xf]
    %v670 = vld [vmem:[%s656 + $0x34] sm:$0xf]
    %v671 = vld [vmem:[%s656 + $0x38] sm:$0xf]
    %v672 = vld [vmem:[%s656 + $0x3c] sm:$0xf]
    %s673 = scalar_lea.vmem %s1, 1
    %v674 = vld [vmem:[%s673] sm:$0x1]
    %v675 = vpack.c.bf16 %v674, %v674
    %v692 = vunpack.c.l.b16 %v657
    %v693 = vunpack.c.l.b16 %v658
    %v694 = vunpack.c.l.b16 %v659
    %v695 = vunpack.c.l.b16 %v660
    %v696 = vunpack.c.l.b16 %v661
    %v697 = vunpack.c.l.b16 %v662
    %v698 = vunpack.c.l.b16 %v663
    %v699 = vunpack.c.l.b16 %v664
    %v700 = vunpack.c.l.b16 %v665
    %v701 = vunpack.c.l.b16 %v666
    %v702 = vunpack.c.l.b16 %v667
    %v703 = vunpack.c.l.b16 %v668
    %v704 = vunpack.c.l.b16 %v669
    %v705 = vunpack.c.l.b16 %v670
    %v706 = vunpack.c.l.b16 %v671
    %v707 = vunpack.c.l.b16 %v672
    %v708 = vpack.c.b16 %v693, %v692
    %v709 = vpack.c.b16 %v695, %v694
    %v710 = vpack.c.b16 %v697, %v696
    %v711 = vpack.c.b16 %v699, %v698
    %v712 = vpack.c.b16 %v701, %v700
    %v713 = vpack.c.b16 %v703, %v702
    %v714 = vpack.c.b16 %v705, %v704
    %v715 = vpack.c.b16 %v707, %v706
    %724 = vmatprep.subr.bf16.mxu0 0
    %725 = vmatpush1.bf16.msra.mxu0 %v708
    %726 = vmatprep.subr.bf16.mxu0 0
    %727 = vmatpush1.bf16.msra.mxu0 %v709
    %728 = vmatprep.subr.bf16.mxu0 0
    %729 = vmatpush1.bf16.msra.mxu0 %v710
    %730 = vmatprep.subr.bf16.mxu0 0
    %731 = vmatpush1.bf16.msra.mxu0 %v711
    %732 = vmatprep.subr.bf16.mxu0 0
    %733 = vmatpush1.bf16.msra.mxu0 %v712
    %734 = vmatprep.subr.bf16.mxu0 0
    %735 = vmatpush1.bf16.msra.mxu0 %v713
    %736 = vmatprep.subr.bf16.mxu0 0
    %737 = vmatpush1.bf16.msra.mxu0 %v714
    %738 = vmatprep.subr.bf16.mxu0 0
    %739 = vmatpush1.bf16.msra.mxu0 %v715
    %740 = vmatprep.subr.bf16.mxu0 0
    %741 = vmatpush1.bf16.msra.mxu0 0
    %742 = vmatprep.subr.bf16.mxu0 0
    %743 = vmatpush1.bf16.msra.mxu0 0
    %744 = vmatprep.subr.bf16.mxu0 0
    %745 = vmatpush1.bf16.msra.mxu0 0
    %746 = vmatprep.subr.bf16.mxu0 0
    %747 = vmatpush1.bf16.msra.mxu0 0
    %748 = vmatprep.subr.bf16.mxu0 0
    %749 = vmatpush1.bf16.msra.mxu0 0
    %750 = vmatprep.subr.bf16.mxu0 0
    %751 = vmatpush1.bf16.msra.mxu0 0
    %752 = vmatprep.subr.bf16.mxu0 0
    %753 = vmatpush1.bf16.msra.mxu0 0
    %754 = vmatprep.subr.bf16.mxu0 0
    %755 = vmatpush1.bf16.msra.mxu0 0
    %756 = vmatprep.mubr.bf16.mxu0 0
    %757 = vmatmul.mubr.bf16.gmra.mrb[0].mxu0 %v675
    %v758 = vpop.f32.mrb[0].mxu0
    %v759 = vadd.f32 0.0, %v758
    %v760 = vpop.f32.mrb[0].mxu0
    %v761 = vpop.f32.mrb[0].mxu0
    %v762 = vpop.f32.mrb[0].mxu0
    %763 = vdwg.mxu0
    %v764 = vadd.f32 %v651, %v759
    %v765 = vtanh.pop %v764
    %v766 = vpack.c.bf16 %v765, %v765
    %767 = vmatprep.subr.bf16.mxu0 0
    %768 = vmatpush1.bf16.msra.mxu0 %v708
    %769 = vmatprep.subr.bf16.mxu0 0
    %770 = vmatpush1.bf16.msra.mxu0 %v709
    %771 = vmatprep.subr.bf16.mxu0 0
    %772 = vmatpush1.bf16.msra.mxu0 %v710
    %773 = vmatprep.subr.bf16.mxu0 0
    %774 = vmatpush1.bf16.msra.mxu0 %v711
    %775 = vmatprep.subr.bf16.mxu0 0
    %776 = vmatpush1.bf16.msra.mxu0 %v712
    %777 = vmatprep.subr.bf16.mxu0 0
    %778 = vmatpush1.bf16.msra.mxu0 %v713
    %779 = vmatprep.subr.bf16.mxu0 0
    %780 = vmatpush1.bf16.msra.mxu0 %v714
    %781 = vmatprep.subr.bf16.mxu0 0
    %782 = vmatpush1.bf16.msra.mxu0 %v715
    %783 = vmatprep.subr.bf16.mxu0 0
    %784 = vmatpush1.bf16.msra.mxu0 0
    %785 = vmatprep.subr.bf16.mxu0 0
    %786 = vmatpush1.bf16.msra.mxu0 0
    %787 = vmatprep.subr.bf16.mxu0 0
    %788 = vmatpush1.bf16.msra.mxu0 0
    %789 = vmatprep.subr.bf16.mxu0 0
    %790 = vmatpush1.bf16.msra.mxu0 0
    %791 = vmatprep.subr.bf16.mxu0 0
    %792 = vmatpush1.bf16.msra.mxu0 0
    %793 = vmatprep.subr.bf16.mxu0 0
    %794 = vmatpush1.bf16.msra.mxu0 0
    %795 = vmatprep.subr.bf16.mxu0 0
    %796 = vmatpush1.bf16.msra.mxu0 0
    %797 = vmatprep.subr.bf16.mxu0 0
    %798 = vmatpush1.bf16.msra.mxu0 0
    %799 = vmatprep.mubr.bf16.mxu0 0
    %800 = vmatmul.mubr.bf16.gmra.mrb[0].mxu0 %v766
    %v801 = vpop.f32.mrb[0].mxu0
    %v802 = vadd.f32 0.0, %v801
    %v803 = vpop.f32.mrb[0].mxu0
    %v804 = vpop.f32.mrb[0].mxu0
    %v805 = vpop.f32.mrb[0].mxu0
    %806 = vdwg.mxu0
    %v808 = vrot.slane %v802, 7
    %v810 = vadd.f32 %v651, %v808
    %v811 = vtanh.pop %v810
    %v812 = vpack.c.bf16 %v811, %v811
    %v814 = vshrl.u32 %v812, 16
    %817 = vmatprep.subr.bf16.mxu0 0
    %818 = vmatpush1.bf16.msra.mxu0 %v708
    %819 = vmatprep.subr.bf16.mxu0 0
    %820 = vmatpush1.bf16.msra.mxu0 %v709
    %821 = vmatprep.subr.bf16.mxu0 0
    %822 = vmatpush1.bf16.msra.mxu0 %v710
    %823 = vmatprep.subr.bf16.mxu0 0
    %824 = vmatpush1.bf16.msra.mxu0 %v711
    %825 = vmatprep.subr.bf16.mxu0 0
    %826 = vmatpush1.bf16.msra.mxu0 %v712
    %827 = vmatprep.subr.bf16.mxu0 0
    %828 = vmatpush1.bf16.msra.mxu0 %v713
    %829 = vmatprep.subr.bf16.mxu0 0
    %830 = vmatpush1.bf16.msra.mxu0 %v714
    %831 = vmatprep.subr.bf16.mxu0 0
    %832 = vmatpush1.bf16.msra.mxu0 %v715
    %833 = vmatprep.subr.bf16.mxu0 0
    %834 = vmatpush1.bf16.msra.mxu0 0
    %835 = vmatprep.subr.bf16.mxu0 0
    %836 = vmatpush1.bf16.msra.mxu0 0
    %837 = vmatprep.subr.bf16.mxu0 0
    %838 = vmatpush1.bf16.msra.mxu0 0
    %839 = vmatprep.subr.bf16.mxu0 0
    %840 = vmatpush1.bf16.msra.mxu0 0
    %841 = vmatprep.subr.bf16.mxu0 0
    %842 = vmatpush1.bf16.msra.mxu0 0
    %843 = vmatprep.subr.bf16.mxu0 0
    %844 = vmatpush1.bf16.msra.mxu0 0
    %845 = vmatprep.subr.bf16.mxu0 0
    %846 = vmatpush1.bf16.msra.mxu0 0
    %847 = vmatprep.subr.bf16.mxu0 0
    %848 = vmatpush1.bf16.msra.mxu0 0
    %849 = vmatprep.mubr.bf16.mxu0 0
    %850 = vmatmul.mubr.bf16.gmra.mrb[0].mxu0 %v814
    %v851 = vpop.f32.mrb[0].mxu0
    %v852 = vadd.f32 0.0, %v851
    %v853 = vpop.f32.mrb[0].mxu0
    %v854 = vpop.f32.mrb[0].mxu0
    %v855 = vpop.f32.mrb[0].mxu0
    %856 = vdwg.mxu0
    %v858 = vrot.slane %v852, 6
    %v860 = vadd.f32 %v651, %v858
    %v861 = vtanh.pop %v860
    %v862 = vpack.c.bf16 %v861, %v861
    %v864 = vrot.slane %v862, 1
    %866 = vmatprep.subr.bf16.mxu0 0
    %867 = vmatpush1.bf16.msra.mxu0 %v708
    %868 = vmatprep.subr.bf16.mxu0 0
    %869 = vmatpush1.bf16.msra.mxu0 %v709
    %870 = vmatprep.subr.bf16.mxu0 0
    %871 = vmatpush1.bf16.msra.mxu0 %v710
    %872 = vmatprep.subr.bf16.mxu0 0
    %873 = vmatpush1.bf16.msra.mxu0 %v711
    %874 = vmatprep.subr.bf16.mxu0 0
    %875 = vmatpush1.bf16.msra.mxu0 %v712
    %876 = vmatprep.subr.bf16.mxu0 0
    %877 = vmatpush1.bf16.msra.mxu0 %v713
    %878 = vmatprep.subr.bf16.mxu0 0
    %879 = vmatpush1.bf16.msra.mxu0 %v714
    %880 = vmatprep.subr.bf16.mxu0 0
    %881 = vmatpush1.bf16.msra.mxu0 %v715
    %882 = vmatprep.subr.bf16.mxu0 0
    %883 = vmatpush1.bf16.msra.mxu0 0
    %884 = vmatprep.subr.bf16.mxu0 0
    %885 = vmatpush1.bf16.msra.mxu0 0
    %886 = vmatprep.subr.bf16.mxu0 0
    %887 = vmatpush1.bf16.msra.mxu0 0
    %888 = vmatprep.subr.bf16.mxu0 0
    %889 = vmatpush1.bf16.msra.mxu0 0
    %890 = vmatprep.subr.bf16.mxu0 0
    %891 = vmatpush1.bf16.msra.mxu0 0
    %892 = vmatprep.subr.bf16.mxu0 0
    %893 = vmatpush1.bf16.msra.mxu0 0
    %894 = vmatprep.subr.bf16.mxu0 0
    %895 = vmatpush1.bf16.msra.mxu0 0
    %896 = vmatprep.subr.bf16.mxu0 0
    %897 = vmatpush1.bf16.msra.mxu0 0
    %898 = vmatprep.mubr.bf16.mxu0 0
    %899 = vmatmul.mubr.bf16.gmra.mrb[0].mxu0 %v864
    %v900 = vpop.f32.mrb[0].mxu0
    %v901 = vadd.f32 0.0, %v900
    %v902 = vpop.f32.mrb[0].mxu0
    %v903 = vpop.f32.mrb[0].mxu0
    %v904 = vpop.f32.mrb[0].mxu0
    %905 = vdwg.mxu0
    %v907 = vrot.slane %v901, 5
    %v909 = vadd.f32 %v651, %v907
    %v910 = vtanh.pop %v909
    %v911 = vpack.c.bf16 %v910, %v910
    %v913 = vshrl.u32 %v911, 16
    %v915 = vrot.slane %v913, 1
    %917 = vmatprep.subr.bf16.mxu0 0
    %918 = vmatpush1.bf16.msra.mxu0 %v708
    %919 = vmatprep.subr.bf16.mxu0 0
    %920 = vmatpush1.bf16.msra.mxu0 %v709
    %921 = vmatprep.subr.bf16.mxu0 0
    %922 = vmatpush1.bf16.msra.mxu0 %v710
    %923 = vmatprep.subr.bf16.mxu0 0
    %924 = vmatpush1.bf16.msra.mxu0 %v711
    %925 = vmatprep.subr.bf16.mxu0 0
    %926 = vmatpush1.bf16.msra.mxu0 %v712
    %927 = vmatprep.subr.bf16.mxu0 0
    %928 = vmatpush1.bf16.msra.mxu0 %v713
    %929 = vmatprep.subr.bf16.mxu0 0
    %930 = vmatpush1.bf16.msra.mxu0 %v714
    %931 = vmatprep.subr.bf16.mxu0 0
    %932 = vmatpush1.bf16.msra.mxu0 %v715
    %933 = vmatprep.subr.bf16.mxu0 0
    %934 = vmatpush1.bf16.msra.mxu0 0
    %935 = vmatprep.subr.bf16.mxu0 0
    %936 = vmatpush1.bf16.msra.mxu0 0
    %937 = vmatprep.subr.bf16.mxu0 0
    %938 = vmatpush1.bf16.msra.mxu0 0
    %939 = vmatprep.subr.bf16.mxu0 0
    %940 = vmatpush1.bf16.msra.mxu0 0
    %941 = vmatprep.subr.bf16.mxu0 0
    %942 = vmatpush1.bf16.msra.mxu0 0
    %943 = vmatprep.subr.bf16.mxu0 0
    %944 = vmatpush1.bf16.msra.mxu0 0
    %945 = vmatprep.subr.bf16.mxu0 0
    %946 = vmatpush1.bf16.msra.mxu0 0
    %947 = vmatprep.subr.bf16.mxu0 0
    %948 = vmatpush1.bf16.msra.mxu0 0
    %949 = vmatprep.mubr.bf16.mxu0 0
    %950 = vmatmul.mubr.bf16.gmra.mrb[0].mxu0 %v915
    %v951 = vpop.f32.mrb[0].mxu0
    %v952 = vadd.f32 0.0, %v951
    %v953 = vpop.f32.mrb[0].mxu0
    %v954 = vpop.f32.mrb[0].mxu0
    %v955 = vpop.f32.mrb[0].mxu0
    %956 = vdwg.mxu0
    %v958 = vrot.slane %v952, 4
    %v960 = vadd.f32 %v651, %v958
    %v961 = vtanh.pop %v960
    %v962 = vpack.c.bf16 %v961, %v961
    %v964 = vrot.slane %v962, 2
    %966 = vmatprep.subr.bf16.mxu0 0
    %967 = vmatpush1.bf16.msra.mxu0 %v708
    %968 = vmatprep.subr.bf16.mxu0 0
    %969 = vmatpush1.bf16.msra.mxu0 %v709
    %970 = vmatprep.subr.bf16.mxu0 0
    %971 = vmatpush1.bf16.msra.mxu0 %v710
    %972 = vmatprep.subr.bf16.mxu0 0
    %973 = vmatpush1.bf16.msra.mxu0 %v711
    %974 = vmatprep.subr.bf16.mxu0 0
    %975 = vmatpush1.bf16.msra.mxu0 %v712
    %976 = vmatprep.subr.bf16.mxu0 0
    %977 = vmatpush1.bf16.msra.mxu0 %v713
    %978 = vmatprep.subr.bf16.mxu0 0
    %979 = vmatpush1.bf16.msra.mxu0 %v714
    %980 = vmatprep.subr.bf16.mxu0 0
    %981 = vmatpush1.bf16.msra.mxu0 %v715
    %982 = vmatprep.subr.bf16.mxu0 0
    %983 = vmatpush1.bf16.msra.mxu0 0
    %984 = vmatprep.subr.bf16.mxu0 0
    %985 = vmatpush1.bf16.msra.mxu0 0
    %986 = vmatprep.subr.bf16.mxu0 0
    %987 = vmatpush1.bf16.msra.mxu0 0
    %988 = vmatprep.subr.bf16.mxu0 0
    %989 = vmatpush1.bf16.msra.mxu0 0
    %990 = vmatprep.subr.bf16.mxu0 0
    %991 = vmatpush1.bf16.msra.mxu0 0
    %992 = vmatprep.subr.bf16.mxu0 0
    %993 = vmatpush1.bf16.msra.mxu0 0
    %994 = vmatprep.subr.bf16.mxu0 0
    %995 = vmatpush1.bf16.msra.mxu0 0
    %996 = vmatprep.subr.bf16.mxu0 0
    %997 = vmatpush1.bf16.msra.mxu0 0
    %998 = vmatprep.mubr.bf16.mxu0 0
    %999 = vmatmul.mubr.bf16.gmra.mrb[0].mxu0 %v964
    %v1000 = vpop.f32.mrb[0].mxu0
    %v1001 = vadd.f32 0.0, %v1000
    %v1002 = vpop.f32.mrb[0].mxu0
    %v1003 = vpop.f32.mrb[0].mxu0
    %v1004 = vpop.f32.mrb[0].mxu0
    %1005 = vdwg.mxu0
    %v1007 = vrot.slane %v1001, 3
    %v1009 = vadd.f32 %v651, %v1007
    %v1010 = vtanh.pop %v1009
    %v1011 = vpack.c.bf16 %v1010, %v1010
    %v1012 = vsel %vm523, %v766, %v812
    %v1015 = vsel %vm525, %v1012, %v862
    %v1017 = vsel %vm532, %v1015, %v911
    %v1020 = vsel %vm534, %v1017, %v962
    %v1022 = vsel %vm541, %v1020, %v1011
    %s1023 = scalar_lea.vmem [#allocation2], 128
    %v1024 = vld [vmem:[%s1023] sm:$0xf]
    %v1025 = vld [vmem:[%s1023 + $0x4] sm:$0xf]
    %v1026 = vld [vmem:[%s1023 + $0x8] sm:$0xf]
    %v1027 = vld [vmem:[%s1023 + $0xc] sm:$0xf]
    %v1028 = vld [vmem:[%s1023 + $0x10] sm:$0xf]
    %v1029 = vld [vmem:[%s1023 + $0x14] sm:$0xf]
    %v1030 = vld [vmem:[%s1023 + $0x18] sm:$0xf]
    %v1031 = vld [vmem:[%s1023 + $0x1c] sm:$0xf]
    %v1032 = vld [vmem:[%s1023 + $0x20] sm:$0xf]
    %v1033 = vld [vmem:[%s1023 + $0x24] sm:$0xf]
    %v1034 = vld [vmem:[%s1023 + $0x28] sm:$0xf]
    %v1035 = vld [vmem:[%s1023 + $0x2c] sm:$0xf]
    %v1036 = vld [vmem:[%s1023 + $0x30] sm:$0xf]
    %v1037 = vld [vmem:[%s1023 + $0x34] sm:$0xf]
    %v1038 = vld [vmem:[%s1023 + $0x38] sm:$0xf]
    %v1039 = vld [vmem:[%s1023 + $0x3c] sm:$0xf]
    %s1040 = scalar_lea.vmem %s4, 2
    %v1041 = vld [vmem:[%s1040] sm:$0x1]
    %v1043 = vlaneseq
    %v1044 = vshrl.u32 %v1043, 7
    %v1045 = vsub.s32 0, %v1044
    %v1046 = vrot.slane %v1041, %v1045
    %v1064 = vunpack.c.l.b16 %v1024
    %v1065 = vunpack.c.l.b16 %v1025
    %v1066 = vunpack.c.l.b16 %v1026
    %v1067 = vunpack.c.l.b16 %v1027
    %v1068 = vunpack.c.l.b16 %v1028
    %v1069 = vunpack.c.l.b16 %v1029
    %v1070 = vunpack.c.l.b16 %v1030
    %v1071 = vunpack.c.l.b16 %v1031
    %v1072 = vunpack.c.l.b16 %v1032
    %v1073 = vunpack.c.l.b16 %v1033
    %v1074 = vunpack.c.l.b16 %v1034
    %v1075 = vunpack.c.l.b16 %v1035
    %v1076 = vunpack.c.l.b16 %v1036
    %v1077 = vunpack.c.l.b16 %v1037
    %v1078 = vunpack.c.l.b16 %v1038
    %v1079 = vunpack.c.l.b16 %v1039
    %v1080 = vpack.c.b16 %v1065, %v1064
    %v1081 = vpack.c.b16 %v1067, %v1066
    %v1082 = vpack.c.b16 %v1069, %v1068
    %v1083 = vpack.c.b16 %v1071, %v1070
    %v1084 = vpack.c.b16 %v1073, %v1072
    %v1085 = vpack.c.b16 %v1075, %v1074
    %v1086 = vpack.c.b16 %v1077, %v1076
    %v1087 = vpack.c.b16 %v1079, %v1078
    %1096 = vmatprep.subr.bf16.mxu0 0
    %1097 = vmatpush1.bf16.msra.mxu0 %v1080
    %1098 = vmatprep.subr.bf16.mxu0 0
    %1099 = vmatpush1.bf16.msra.mxu0 %v1081
    %1100 = vmatprep.subr.bf16.mxu0 0
    %1101 = vmatpush1.bf16.msra.mxu0 %v1082
    %1102 = vmatprep.subr.bf16.mxu0 0
    %1103 = vmatpush1.bf16.msra.mxu0 %v1083
    %1104 = vmatprep.subr.bf16.mxu0 0
    %1105 = vmatpush1.bf16.msra.mxu0 %v1084
    %1106 = vmatprep.subr.bf16.mxu0 0
    %1107 = vmatpush1.bf16.msra.mxu0 %v1085
    %1108 = vmatprep.subr.bf16.mxu0 0
    %1109 = vmatpush1.bf16.msra.mxu0 %v1086
    %1110 = vmatprep.subr.bf16.mxu0 0
    %1111 = vmatpush1.bf16.msra.mxu0 %v1087
    %1112 = vmatprep.subr.bf16.mxu0 0
    %1113 = vmatpush1.bf16.msra.mxu0 0
    %1114 = vmatprep.subr.bf16.mxu0 0
    %1115 = vmatpush1.bf16.msra.mxu0 0
    %1116 = vmatprep.subr.bf16.mxu0 0
    %1117 = vmatpush1.bf16.msra.mxu0 0
    %1118 = vmatprep.subr.bf16.mxu0 0
    %1119 = vmatpush1.bf16.msra.mxu0 0
    %1120 = vmatprep.subr.bf16.mxu0 0
    %1121 = vmatpush1.bf16.msra.mxu0 0
    %1122 = vmatprep.subr.bf16.mxu0 0
    %1123 = vmatpush1.bf16.msra.mxu0 0
    %1124 = vmatprep.subr.bf16.mxu0 0
    %1125 = vmatpush1.bf16.msra.mxu0 0
    %1126 = vmatprep.subr.bf16.mxu0 0
    %1127 = vmatpush1.bf16.msra.mxu0 0
    %1128 = vmatprep.mubr.bf16.mxu0 0
    %1129 = vmatmul.mubr.bf16.gmra.mrb[0].mxu0 %v1022
    %v1130 = vpop.f32.mrb[0].mxu0
    %v1131 = vadd.f32 %v1046, %v1130
    %v1132 = vpop.f32.mrb[0].mxu0
    %v1133 = vpop.f32.mrb[0].mxu0
    %v1134 = vpop.f32.mrb[0].mxu0
    %1135 = vdwg.mxu0
    %s1136 = scalar_lea.vmem [#allocation4], 128
    %v1137 = vld [vmem:[%s1136] sm:$0xf]
    %v1138 = vld [vmem:[%s1136 + $0x4] sm:$0xf]
    %v1139 = vld [vmem:[%s1136 + $0x8] sm:$0xf]
    %v1140 = vld [vmem:[%s1136 + $0xc] sm:$0xf]
    %v1141 = vld [vmem:[%s1136 + $0x10] sm:$0xf]
    %v1142 = vld [vmem:[%s1136 + $0x14] sm:$0xf]
    %v1143 = vld [vmem:[%s1136 + $0x18] sm:$0xf]
    %v1144 = vld [vmem:[%s1136 + $0x1c] sm:$0xf]
    %v1145 = vld [vmem:[%s1136 + $0x20] sm:$0xf]
    %v1146 = vld [vmem:[%s1136 + $0x24] sm:$0xf]
    %v1147 = vld [vmem:[%s1136 + $0x28] sm:$0xf]
    %v1148 = vld [vmem:[%s1136 + $0x2c] sm:$0xf]
    %v1149 = vld [vmem:[%s1136 + $0x30] sm:$0xf]
    %v1150 = vld [vmem:[%s1136 + $0x34] sm:$0xf]
    %v1151 = vld [vmem:[%s1136 + $0x38] sm:$0xf]
    %v1152 = vld [vmem:[%s1136 + $0x3c] sm:$0xf]
    %s1153 = scalar_lea.vmem %s1, 2
    %v1154 = vld [vmem:[%s1153] sm:$0x1]
    %v1155 = vpack.c.bf16 %v1154, %v1154
    %v1172 = vunpack.c.l.b16 %v1137
    %v1173 = vunpack.c.l.b16 %v1138
    %v1174 = vunpack.c.l.b16 %v1139
    %v1175 = vunpack.c.l.b16 %v1140
    %v1176 = vunpack.c.l.b16 %v1141
    %v1177 = vunpack.c.l.b16 %v1142
    %v1178 = vunpack.c.l.b16 %v1143
    %v1179 = vunpack.c.l.b16 %v1144
    %v1180 = vunpack.c.l.b16 %v1145
    %v1181 = vunpack.c.l.b16 %v1146
    %v1182 = vunpack.c.l.b16 %v1147
    %v1183 = vunpack.c.l.b16 %v1148
    %v1184 = vunpack.c.l.b16 %v1149
    %v1185 = vunpack.c.l.b16 %v1150
    %v1186 = vunpack.c.l.b16 %v1151
    %v1187 = vunpack.c.l.b16 %v1152
    %v1188 = vpack.c.b16 %v1173, %v1172
    %v1189 = vpack.c.b16 %v1175, %v1174
    %v1190 = vpack.c.b16 %v1177, %v1176
    %v1191 = vpack.c.b16 %v1179, %v1178
    %v1192 = vpack.c.b16 %v1181, %v1180
    %v1193 = vpack.c.b16 %v1183, %v1182
    %v1194 = vpack.c.b16 %v1185, %v1184
    %v1195 = vpack.c.b16 %v1187, %v1186
    %1204 = vmatprep.subr.bf16.mxu0 0
    %1205 = vmatpush1.bf16.msra.mxu0 %v1188
    %1206 = vmatprep.subr.bf16.mxu0 0
    %1207 = vmatpush1.bf16.msra.mxu0 %v1189
    %1208 = vmatprep.subr.bf16.mxu0 0
    %1209 = vmatpush1.bf16.msra.mxu0 %v1190
    %1210 = vmatprep.subr.bf16.mxu0 0
    %1211 = vmatpush1.bf16.msra.mxu0 %v1191
    %1212 = vmatprep.subr.bf16.mxu0 0
    %1213 = vmatpush1.bf16.msra.mxu0 %v1192
    %1214 = vmatprep.subr.bf16.mxu0 0
    %1215 = vmatpush1.bf16.msra.mxu0 %v1193
    %1216 = vmatprep.subr.bf16.mxu0 0
    %1217 = vmatpush1.bf16.msra.mxu0 %v1194
    %1218 = vmatprep.subr.bf16.mxu0 0
    %1219 = vmatpush1.bf16.msra.mxu0 %v1195
    %1220 = vmatprep.subr.bf16.mxu0 0
    %1221 = vmatpush1.bf16.msra.mxu0 0
    %1222 = vmatprep.subr.bf16.mxu0 0
    %1223 = vmatpush1.bf16.msra.mxu0 0
    %1224 = vmatprep.subr.bf16.mxu0 0
    %1225 = vmatpush1.bf16.msra.mxu0 0
    %1226 = vmatprep.subr.bf16.mxu0 0
    %1227 = vmatpush1.bf16.msra.mxu0 0
    %1228 = vmatprep.subr.bf16.mxu0 0
    %1229 = vmatpush1.bf16.msra.mxu0 0
    %1230 = vmatprep.subr.bf16.mxu0 0
    %1231 = vmatpush1.bf16.msra.mxu0 0
    %1232 = vmatprep.subr.bf16.mxu0 0
    %1233 = vmatpush1.bf16.msra.mxu0 0
    %1234 = vmatprep.subr.bf16.mxu0 0
    %1235 = vmatpush1.bf16.msra.mxu0 0
    %1236 = vmatprep.mubr.bf16.mxu0 0
    %1237 = vmatmul.mubr.bf16.gmra.mrb[0].mxu0 %v1155
    %v1238 = vpop.f32.mrb[0].mxu0
    %v1239 = vadd.f32 0.0, %v1238
    %v1240 = vpop.f32.mrb[0].mxu0
    %v1241 = vpop.f32.mrb[0].mxu0
    %v1242 = vpop.f32.mrb[0].mxu0
    %1243 = vdwg.mxu0
    %v1244 = vadd.f32 %v1131, %v1239
    %v1245 = vtanh.pop %v1244
    %v1246 = vpack.c.bf16 %v1245, %v1245
    %1247 = vmatprep.subr.bf16.mxu0 0
    %1248 = vmatpush1.bf16.msra.mxu0 %v1188
    %1249 = vmatprep.subr.bf16.mxu0 0
    %1250 = vmatpush1.bf16.msra.mxu0 %v1189
    %1251 = vmatprep.subr.bf16.mxu0 0
    %1252 = vmatpush1.bf16.msra.mxu0 %v1190
    %1253 = vmatprep.subr.bf16.mxu0 0
    %1254 = vmatpush1.bf16.msra.mxu0 %v1191
    %1255 = vmatprep.subr.bf16.mxu0 0
    %1256 = vmatpush1.bf16.msra.mxu0 %v1192
    %1257 = vmatprep.subr.bf16.mxu0 0
    %1258 = vmatpush1.bf16.msra.mxu0 %v1193
    %1259 = vmatprep.subr.bf16.mxu0 0
    %1260 = vmatpush1.bf16.msra.mxu0 %v1194
    %1261 = vmatprep.subr.bf16.mxu0 0
    %1262 = vmatpush1.bf16.msra.mxu0 %v1195
    %1263 = vmatprep.subr.bf16.mxu0 0
    %1264 = vmatpush1.bf16.msra.mxu0 0
    %1265 = vmatprep.subr.bf16.mxu0 0
    %1266 = vmatpush1.bf16.msra.mxu0 0
    %1267 = vmatprep.subr.bf16.mxu0 0
    %1268 = vmatpush1.bf16.msra.mxu0 0
    %1269 = vmatprep.subr.bf16.mxu0 0
    %1270 = vmatpush1.bf16.msra.mxu0 0
    %1271 = vmatprep.subr.bf16.mxu0 0
    %1272 = vmatpush1.bf16.msra.mxu0 0
    %1273 = vmatprep.subr.bf16.mxu0 0
    %1274 = vmatpush1.bf16.msra.mxu0 0
    %1275 = vmatprep.subr.bf16.mxu0 0
    %1276 = vmatpush1.bf16.msra.mxu0 0
    %1277 = vmatprep.subr.bf16.mxu0 0
    %1278 = vmatpush1.bf16.msra.mxu0 0
    %1279 = vmatprep.mubr.bf16.mxu0 0
    %1280 = vmatmul.mubr.bf16.gmra.mrb[0].mxu0 %v1246
    %v1281 = vpop.f32.mrb[0].mxu0
    %v1282 = vadd.f32 0.0, %v1281
    %v1283 = vpop.f32.mrb[0].mxu0
    %v1284 = vpop.f32.mrb[0].mxu0
    %v1285 = vpop.f32.mrb[0].mxu0
    %1286 = vdwg.mxu0
    %v1288 = vrot.slane %v1282, 7
    %v1290 = vadd.f32 %v1131, %v1288
    %v1291 = vtanh.pop %v1290
    %v1292 = vpack.c.bf16 %v1291, %v1291
    %v1294 = vshrl.u32 %v1292, 16
    %1297 = vmatprep.subr.bf16.mxu0 0
    %1298 = vmatpush1.bf16.msra.mxu0 %v1188
    %1299 = vmatprep.subr.bf16.mxu0 0
    %1300 = vmatpush1.bf16.msra.mxu0 %v1189
    %1301 = vmatprep.subr.bf16.mxu0 0
    %1302 = vmatpush1.bf16.msra.mxu0 %v1190
    %1303 = vmatprep.subr.bf16.mxu0 0
    %1304 = vmatpush1.bf16.msra.mxu0 %v1191
    %1305 = vmatprep.subr.bf16.mxu0 0
    %1306 = vmatpush1.bf16.msra.mxu0 %v1192
    %1307 = vmatprep.subr.bf16.mxu0 0
    %1308 = vmatpush1.bf16.msra.mxu0 %v1193
    %1309 = vmatprep.subr.bf16.mxu0 0
    %1310 = vmatpush1.bf16.msra.mxu0 %v1194
    %1311 = vmatprep.subr.bf16.mxu0 0
    %1312 = vmatpush1.bf16.msra.mxu0 %v1195
    %1313 = vmatprep.subr.bf16.mxu0 0
    %1314 = vmatpush1.bf16.msra.mxu0 0
    %1315 = vmatprep.subr.bf16.mxu0 0
    %1316 = vmatpush1.bf16.msra.mxu0 0
    %1317 = vmatprep.subr.bf16.mxu0 0
    %1318 = vmatpush1.bf16.msra.mxu0 0
    %1319 = vmatprep.subr.bf16.mxu0 0
    %1320 = vmatpush1.bf16.msra.mxu0 0
    %1321 = vmatprep.subr.bf16.mxu0 0
    %1322 = vmatpush1.bf16.msra.mxu0 0
    %1323 = vmatprep.subr.bf16.mxu0 0
    %1324 = vmatpush1.bf16.msra.mxu0 0
    %1325 = vmatprep.subr.bf16.mxu0 0
    %1326 = vmatpush1.bf16.msra.mxu0 0
    %1327 = vmatprep.subr.bf16.mxu0 0
    %1328 = vmatpush1.bf16.msra.mxu0 0
    %1329 = vmatprep.mubr.bf16.mxu0 0
    %1330 = vmatmul.mubr.bf16.gmra.mrb[0].mxu0 %v1294
    %v1331 = vpop.f32.mrb[0].mxu0
    %v1332 = vadd.f32 0.0, %v1331
    %v1333 = vpop.f32.mrb[0].mxu0
    %v1334 = vpop.f32.mrb[0].mxu0
    %v1335 = vpop.f32.mrb[0].mxu0
    %1336 = vdwg.mxu0
    %v1338 = vrot.slane %v1332, 6
    %v1340 = vadd.f32 %v1131, %v1338
    %v1341 = vtanh.pop %v1340
    %v1342 = vpack.c.bf16 %v1341, %v1341
    %v1344 = vrot.slane %v1342, 1
    %1346 = vmatprep.subr.bf16.mxu0 0
    %1347 = vmatpush1.bf16.msra.mxu0 %v1188
    %1348 = vmatprep.subr.bf16.mxu0 0
    %1349 = vmatpush1.bf16.msra.mxu0 %v1189
    %1350 = vmatprep.subr.bf16.mxu0 0
    %1351 = vmatpush1.bf16.msra.mxu0 %v1190
    %1352 = vmatprep.subr.bf16.mxu0 0
    %1353 = vmatpush1.bf16.msra.mxu0 %v1191
    %1354 = vmatprep.subr.bf16.mxu0 0
    %1355 = vmatpush1.bf16.msra.mxu0 %v1192
    %1356 = vmatprep.subr.bf16.mxu0 0
    %1357 = vmatpush1.bf16.msra.mxu0 %v1193
    %1358 = vmatprep.subr.bf16.mxu0 0
    %1359 = vmatpush1.bf16.msra.mxu0 %v1194
    %1360 = vmatprep.subr.bf16.mxu0 0
    %1361 = vmatpush1.bf16.msra.mxu0 %v1195
    %1362 = vmatprep.subr.bf16.mxu0 0
    %1363 = vmatpush1.bf16.msra.mxu0 0
    %1364 = vmatprep.subr.bf16.mxu0 0
    %1365 = vmatpush1.bf16.msra.mxu0 0
    %1366 = vmatprep.subr.bf16.mxu0 0
    %1367 = vmatpush1.bf16.msra.mxu0 0
    %1368 = vmatprep.subr.bf16.mxu0 0
    %1369 = vmatpush1.bf16.msra.mxu0 0
    %1370 = vmatprep.subr.bf16.mxu0 0
    %1371 = vmatpush1.bf16.msra.mxu0 0
    %1372 = vmatprep.subr.bf16.mxu0 0
    %1373 = vmatpush1.bf16.msra.mxu0 0
    %1374 = vmatprep.subr.bf16.mxu0 0
    %1375 = vmatpush1.bf16.msra.mxu0 0
    %1376 = vmatprep.subr.bf16.mxu0 0
    %1377 = vmatpush1.bf16.msra.mxu0 0
    %1378 = vmatprep.mubr.bf16.mxu0 0
    %1379 = vmatmul.mubr.bf16.gmra.mrb[0].mxu0 %v1344
    %v1380 = vpop.f32.mrb[0].mxu0
    %v1381 = vadd.f32 0.0, %v1380
    %v1382 = vpop.f32.mrb[0].mxu0
    %v1383 = vpop.f32.mrb[0].mxu0
    %v1384 = vpop.f32.mrb[0].mxu0
    %1385 = vdwg.mxu0
    %v1387 = vrot.slane %v1381, 5
    %v1389 = vadd.f32 %v1131, %v1387
    %v1390 = vtanh.pop %v1389
    %v1391 = vpack.c.bf16 %v1390, %v1390
    %v1393 = vshrl.u32 %v1391, 16
    %v1395 = vrot.slane %v1393, 1
    %1397 = vmatprep.subr.bf16.mxu0 0
    %1398 = vmatpush1.bf16.msra.mxu0 %v1188
    %1399 = vmatprep.subr.bf16.mxu0 0
    %1400 = vmatpush1.bf16.msra.mxu0 %v1189
    %1401 = vmatprep.subr.bf16.mxu0 0
    %1402 = vmatpush1.bf16.msra.mxu0 %v1190
    %1403 = vmatprep.subr.bf16.mxu0 0
    %1404 = vmatpush1.bf16.msra.mxu0 %v1191
    %1405 = vmatprep.subr.bf16.mxu0 0
    %1406 = vmatpush1.bf16.msra.mxu0 %v1192
    %1407 = vmatprep.subr.bf16.mxu0 0
    %1408 = vmatpush1.bf16.msra.mxu0 %v1193
    %1409 = vmatprep.subr.bf16.mxu0 0
    %1410 = vmatpush1.bf16.msra.mxu0 %v1194
    %1411 = vmatprep.subr.bf16.mxu0 0
    %1412 = vmatpush1.bf16.msra.mxu0 %v1195
    %1413 = vmatprep.subr.bf16.mxu0 0
    %1414 = vmatpush1.bf16.msra.mxu0 0
    %1415 = vmatprep.subr.bf16.mxu0 0
    %1416 = vmatpush1.bf16.msra.mxu0 0
    %1417 = vmatprep.subr.bf16.mxu0 0
    %1418 = vmatpush1.bf16.msra.mxu0 0
    %1419 = vmatprep.subr.bf16.mxu0 0
    %1420 = vmatpush1.bf16.msra.mxu0 0
    %1421 = vmatprep.subr.bf16.mxu0 0
    %1422 = vmatpush1.bf16.msra.mxu0 0
    %1423 = vmatprep.subr.bf16.mxu0 0
    %1424 = vmatpush1.bf16.msra.mxu0 0
    %1425 = vmatprep.subr.bf16.mxu0 0
    %1426 = vmatpush1.bf16.msra.mxu0 0
    %1427 = vmatprep.subr.bf16.mxu0 0
    %1428 = vmatpush1.bf16.msra.mxu0 0
    %1429 = vmatprep.mubr.bf16.mxu0 0
    %1430 = vmatmul.mubr.bf16.gmra.mrb[0].mxu0 %v1395
    %v1431 = vpop.f32.mrb[0].mxu0
    %v1432 = vadd.f32 0.0, %v1431
    %v1433 = vpop.f32.mrb[0].mxu0
    %v1434 = vpop.f32.mrb[0].mxu0
    %v1435 = vpop.f32.mrb[0].mxu0
    %1436 = vdwg.mxu0
    %v1438 = vrot.slane %v1432, 4
    %v1440 = vadd.f32 %v1131, %v1438
    %v1441 = vtanh.pop %v1440
    %v1442 = vpack.c.bf16 %v1441, %v1441
    %v1444 = vrot.slane %v1442, 2
    %1446 = vmatprep.subr.bf16.mxu0 0
    %1447 = vmatpush1.bf16.msra.mxu0 %v1188
    %1448 = vmatprep.subr.bf16.mxu0 0
    %1449 = vmatpush1.bf16.msra.mxu0 %v1189
    %1450 = vmatprep.subr.bf16.mxu0 0
    %1451 = vmatpush1.bf16.msra.mxu0 %v1190
    %1452 = vmatprep.subr.bf16.mxu0 0
    %1453 = vmatpush1.bf16.msra.mxu0 %v1191
    %1454 = vmatprep.subr.bf16.mxu0 0
    %1455 = vmatpush1.bf16.msra.mxu0 %v1192
    %1456 = vmatprep.subr.bf16.mxu0 0
    %1457 = vmatpush1.bf16.msra.mxu0 %v1193
    %1458 = vmatprep.subr.bf16.mxu0 0
    %1459 = vmatpush1.bf16.msra.mxu0 %v1194
    %1460 = vmatprep.subr.bf16.mxu0 0
    %1461 = vmatpush1.bf16.msra.mxu0 %v1195
    %1462 = vmatprep.subr.bf16.mxu0 0
    %1463 = vmatpush1.bf16.msra.mxu0 0
    %1464 = vmatprep.subr.bf16.mxu0 0
    %1465 = vmatpush1.bf16.msra.mxu0 0
    %1466 = vmatprep.subr.bf16.mxu0 0
    %1467 = vmatpush1.bf16.msra.mxu0 0
    %1468 = vmatprep.subr.bf16.mxu0 0
    %1469 = vmatpush1.bf16.msra.mxu0 0
    %1470 = vmatprep.subr.bf16.mxu0 0
    %1471 = vmatpush1.bf16.msra.mxu0 0
    %1472 = vmatprep.subr.bf16.mxu0 0
    %1473 = vmatpush1.bf16.msra.mxu0 0
    %1474 = vmatprep.subr.bf16.mxu0 0
    %1475 = vmatpush1.bf16.msra.mxu0 0
    %1476 = vmatprep.subr.bf16.mxu0 0
    %1477 = vmatpush1.bf16.msra.mxu0 0
    %1478 = vmatprep.mubr.bf16.mxu0 0
    %1479 = vmatmul.mubr.bf16.gmra.mrb[0].mxu0 %v1444
    %v1480 = vpop.f32.mrb[0].mxu0
    %v1481 = vadd.f32 0.0, %v1480
    %v1482 = vpop.f32.mrb[0].mxu0
    %v1483 = vpop.f32.mrb[0].mxu0
    %v1484 = vpop.f32.mrb[0].mxu0
    %1485 = vdwg.mxu0
    %v1487 = vrot.slane %v1481, 3
    %v1489 = vadd.f32 %v1131, %v1487
    %v1490 = vtanh.pop %v1489
    %v1491 = vpack.c.bf16 %v1490, %v1490
    %v1492 = vsel %vm523, %v1246, %v1292
    %v1495 = vsel %vm525, %v1492, %v1342
    %v1497 = vsel %vm532, %v1495, %v1391
    %v1500 = vsel %vm534, %v1497, %v1442
    %v1502 = vsel %vm541, %v1500, %v1491
    %s1503 = scalar_lea.vmem [#allocation2], 192
    %v1504 = vld [vmem:[%s1503] sm:$0xf]
    %v1505 = vld [vmem:[%s1503 + $0x4] sm:$0xf]
    %v1506 = vld [vmem:[%s1503 + $0x8] sm:$0xf]
    %v1507 = vld [vmem:[%s1503 + $0xc] sm:$0xf]
    %v1508 = vld [vmem:[%s1503 + $0x10] sm:$0xf]
    %v1509 = vld [vmem:[%s1503 + $0x14] sm:$0xf]
    %v1510 = vld [vmem:[%s1503 + $0x18] sm:$0xf]
    %v1511 = vld [vmem:[%s1503 + $0x1c] sm:$0xf]
    %v1512 = vld [vmem:[%s1503 + $0x20] sm:$0xf]
    %v1513 = vld [vmem:[%s1503 + $0x24] sm:$0xf]
    %v1514 = vld [vmem:[%s1503 + $0x28] sm:$0xf]
    %v1515 = vld [vmem:[%s1503 + $0x2c] sm:$0xf]
    %v1516 = vld [vmem:[%s1503 + $0x30] sm:$0xf]
    %v1517 = vld [vmem:[%s1503 + $0x34] sm:$0xf]
    %v1518 = vld [vmem:[%s1503 + $0x38] sm:$0xf]
    %v1519 = vld [vmem:[%s1503 + $0x3c] sm:$0xf]
    %s1520 = scalar_lea.vmem %s4, 3
    %v1521 = vld [vmem:[%s1520] sm:$0x1]
    %v1523 = vlaneseq
    %v1524 = vshrl.u32 %v1523, 7
    %v1525 = vsub.s32 0, %v1524
    %v1526 = vrot.slane %v1521, %v1525
    %v1544 = vunpack.c.l.b16 %v1504
    %v1545 = vunpack.c.l.b16 %v1505
    %v1546 = vunpack.c.l.b16 %v1506
    %v1547 = vunpack.c.l.b16 %v1507
    %v1548 = vunpack.c.l.b16 %v1508
    %v1549 = vunpack.c.l.b16 %v1509
    %v1550 = vunpack.c.l.b16 %v1510
    %v1551 = vunpack.c.l.b16 %v1511
    %v1552 = vunpack.c.l.b16 %v1512
    %v1553 = vunpack.c.l.b16 %v1513
    %v1554 = vunpack.c.l.b16 %v1514
    %v1555 = vunpack.c.l.b16 %v1515
    %v1556 = vunpack.c.l.b16 %v1516
    %v1557 = vunpack.c.l.b16 %v1517
    %v1558 = vunpack.c.l.b16 %v1518
    %v1559 = vunpack.c.l.b16 %v1519
    %v1560 = vpack.c.b16 %v1545, %v1544
    %v1561 = vpack.c.b16 %v1547, %v1546
    %v1562 = vpack.c.b16 %v1549, %v1548
    %v1563 = vpack.c.b16 %v1551, %v1550
    %v1564 = vpack.c.b16 %v1553, %v1552
    %v1565 = vpack.c.b16 %v1555, %v1554
    %v1566 = vpack.c.b16 %v1557, %v1556
    %v1567 = vpack.c.b16 %v1559, %v1558
    %1576 = vmatprep.subr.bf16.mxu0 0
    %1577 = vmatpush1.bf16.msra.mxu0 %v1560
    %1578 = vmatprep.subr.bf16.mxu0 0
    %1579 = vmatpush1.bf16.msra.mxu0 %v1561
    %1580 = vmatprep.subr.bf16.mxu0 0
    %1581 = vmatpush1.bf16.msra.mxu0 %v1562
    %1582 = vmatprep.subr.bf16.mxu0 0
    %1583 = vmatpush1.bf16.msra.mxu0 %v1563
    %1584 = vmatprep.subr.bf16.mxu0 0
    %1585 = vmatpush1.bf16.msra.mxu0 %v1564
    %1586 = vmatprep.subr.bf16.mxu0 0
    %1587 = vmatpush1.bf16.msra.mxu0 %v1565
    %1588 = vmatprep.subr.bf16.mxu0 0
    %1589 = vmatpush1.bf16.msra.mxu0 %v1566
    %1590 = vmatprep.subr.bf16.mxu0 0
    %1591 = vmatpush1.bf16.msra.mxu0 %v1567
    %1592 = vmatprep.subr.bf16.mxu0 0
    %1593 = vmatpush1.bf16.msra.mxu0 0
    %1594 = vmatprep.subr.bf16.mxu0 0
    %1595 = vmatpush1.bf16.msra.mxu0 0
    %1596 = vmatprep.subr.bf16.mxu0 0
    %1597 = vmatpush1.bf16.msra.mxu0 0
    %1598 = vmatprep.subr.bf16.mxu0 0
    %1599 = vmatpush1.bf16.msra.mxu0 0
    %1600 = vmatprep.subr.bf16.mxu0 0
    %1601 = vmatpush1.bf16.msra.mxu0 0
    %1602 = vmatprep.subr.bf16.mxu0 0
    %1603 = vmatpush1.bf16.msra.mxu0 0
    %1604 = vmatprep.subr.bf16.mxu0 0
    %1605 = vmatpush1.bf16.msra.mxu0 0
    %1606 = vmatprep.subr.bf16.mxu0 0
    %1607 = vmatpush1.bf16.msra.mxu0 0
    %1608 = vmatprep.mubr.bf16.mxu0 0
    %1609 = vmatmul.mubr.bf16.gmra.mrb[0].mxu0 %v1502
    %v1610 = vpop.f32.mrb[0].mxu0
    %v1611 = vadd.f32 %v1526, %v1610
    %v1612 = vpop.f32.mrb[0].mxu0
    %v1613 = vpop.f32.mrb[0].mxu0
    %v1614 = vpop.f32.mrb[0].mxu0
    %1615 = vdwg.mxu0
    %s1616 = scalar_lea.vmem [#allocation4], 192
    %v1617 = vld [vmem:[%s1616] sm:$0xf]
    %v1618 = vld [vmem:[%s1616 + $0x4] sm:$0xf]
    %v1619 = vld [vmem:[%s1616 + $0x8] sm:$0xf]
    %v1620 = vld [vmem:[%s1616 + $0xc] sm:$0xf]
    %v1621 = vld [vmem:[%s1616 + $0x10] sm:$0xf]
    %v1622 = vld [vmem:[%s1616 + $0x14] sm:$0xf]
    %v1623 = vld [vmem:[%s1616 + $0x18] sm:$0xf]
    %v1624 = vld [vmem:[%s1616 + $0x1c] sm:$0xf]
    %v1625 = vld [vmem:[%s1616 + $0x20] sm:$0xf]
    %v1626 = vld [vmem:[%s1616 + $0x24] sm:$0xf]
    %v1627 = vld [vmem:[%s1616 + $0x28] sm:$0xf]
    %v1628 = vld [vmem:[%s1616 + $0x2c] sm:$0xf]
    %v1629 = vld [vmem:[%s1616 + $0x30] sm:$0xf]
    %v1630 = vld [vmem:[%s1616 + $0x34] sm:$0xf]
    %v1631 = vld [vmem:[%s1616 + $0x38] sm:$0xf]
    %v1632 = vld [vmem:[%s1616 + $0x3c] sm:$0xf]
    %s1633 = scalar_lea.vmem %s1, 3
    %v1634 = vld [vmem:[%s1633] sm:$0x1]
    %v1635 = vpack.c.bf16 %v1634, %v1634
    %v1652 = vunpack.c.l.b16 %v1617
    %v1653 = vunpack.c.l.b16 %v1618
    %v1654 = vunpack.c.l.b16 %v1619
    %v1655 = vunpack.c.l.b16 %v1620
    %v1656 = vunpack.c.l.b16 %v1621
    %v1657 = vunpack.c.l.b16 %v1622
    %v1658 = vunpack.c.l.b16 %v1623
    %v1659 = vunpack.c.l.b16 %v1624
    %v1660 = vunpack.c.l.b16 %v1625
    %v1661 = vunpack.c.l.b16 %v1626
    %v1662 = vunpack.c.l.b16 %v1627
    %v1663 = vunpack.c.l.b16 %v1628
    %v1664 = vunpack.c.l.b16 %v1629
    %v1665 = vunpack.c.l.b16 %v1630
    %v1666 = vunpack.c.l.b16 %v1631
    %v1667 = vunpack.c.l.b16 %v1632
    %v1668 = vpack.c.b16 %v1653, %v1652
    %v1669 = vpack.c.b16 %v1655, %v1654
    %v1670 = vpack.c.b16 %v1657, %v1656
    %v1671 = vpack.c.b16 %v1659, %v1658
    %v1672 = vpack.c.b16 %v1661, %v1660
    %v1673 = vpack.c.b16 %v1663, %v1662
    %v1674 = vpack.c.b16 %v1665, %v1664
    %v1675 = vpack.c.b16 %v1667, %v1666
    %1684 = vmatprep.subr.bf16.mxu0 0
    %1685 = vmatpush1.bf16.msra.mxu0 %v1668
    %1686 = vmatprep.subr.bf16.mxu0 0
    %1687 = vmatpush1.bf16.msra.mxu0 %v1669
    %1688 = vmatprep.subr.bf16.mxu0 0
    %1689 = vmatpush1.bf16.msra.mxu0 %v1670
    %1690 = vmatprep.subr.bf16.mxu0 0
    %1691 = vmatpush1.bf16.msra.mxu0 %v1671
    %1692 = vmatprep.subr.bf16.mxu0 0
    %1693 = vmatpush1.bf16.msra.mxu0 %v1672
    %1694 = vmatprep.subr.bf16.mxu0 0
    %1695 = vmatpush1.bf16.msra.mxu0 %v1673
    %1696 = vmatprep.subr.bf16.mxu0 0
    %1697 = vmatpush1.bf16.msra.mxu0 %v1674
    %1698 = vmatprep.subr.bf16.mxu0 0
    %1699 = vmatpush1.bf16.msra.mxu0 %v1675
    %1700 = vmatprep.subr.bf16.mxu0 0
    %1701 = vmatpush1.bf16.msra.mxu0 0
    %1702 = vmatprep.subr.bf16.mxu0 0
    %1703 = vmatpush1.bf16.msra.mxu0 0
    %1704 = vmatprep.subr.bf16.mxu0 0
    %1705 = vmatpush1.bf16.msra.mxu0 0
    %1706 = vmatprep.subr.bf16.mxu0 0
    %1707 = vmatpush1.bf16.msra.mxu0 0
    %1708 = vmatprep.subr.bf16.mxu0 0
    %1709 = vmatpush1.bf16.msra.mxu0 0
    %1710 = vmatprep.subr.bf16.mxu0 0
    %1711 = vmatpush1.bf16.msra.mxu0 0
    %1712 = vmatprep.subr.bf16.mxu0 0
    %1713 = vmatpush1.bf16.msra.mxu0 0
    %1714 = vmatprep.subr.bf16.mxu0 0
    %1715 = vmatpush1.bf16.msra.mxu0 0
    %1716 = vmatprep.mubr.bf16.mxu0 0
    %1717 = vmatmul.mubr.bf16.gmra.mrb[0].mxu0 %v1635
    %v1718 = vpop.f32.mrb[0].mxu0
    %v1719 = vadd.f32 0.0, %v1718
    %v1720 = vpop.f32.mrb[0].mxu0
    %v1721 = vpop.f32.mrb[0].mxu0
    %v1722 = vpop.f32.mrb[0].mxu0
    %1723 = vdwg.mxu0
    %v1724 = vadd.f32 %v1611, %v1719
    %v1725 = vtanh.pop %v1724
    %v1726 = vpack.c.bf16 %v1725, %v1725
    %1727 = vmatprep.subr.bf16.mxu0 0
    %1728 = vmatpush1.bf16.msra.mxu0 %v1668
    %1729 = vmatprep.subr.bf16.mxu0 0
    %1730 = vmatpush1.bf16.msra.mxu0 %v1669
    %1731 = vmatprep.subr.bf16.mxu0 0
    %1732 = vmatpush1.bf16.msra.mxu0 %v1670
    %1733 = vmatprep.subr.bf16.mxu0 0
    %1734 = vmatpush1.bf16.msra.mxu0 %v1671
    %1735 = vmatprep.subr.bf16.mxu0 0
    %1736 = vmatpush1.bf16.msra.mxu0 %v1672
    %1737 = vmatprep.subr.bf16.mxu0 0
    %1738 = vmatpush1.bf16.msra.mxu0 %v1673
    %1739 = vmatprep.subr.bf16.mxu0 0
    %1740 = vmatpush1.bf16.msra.mxu0 %v1674
    %1741 = vmatprep.subr.bf16.mxu0 0
    %1742 = vmatpush1.bf16.msra.mxu0 %v1675
    %1743 = vmatprep.subr.bf16.mxu0 0
    %1744 = vmatpush1.bf16.msra.mxu0 0
    %1745 = vmatprep.subr.bf16.mxu0 0
    %1746 = vmatpush1.bf16.msra.mxu0 0
    %1747 = vmatprep.subr.bf16.mxu0 0
    %1748 = vmatpush1.bf16.msra.mxu0 0
    %1749 = vmatprep.subr.bf16.mxu0 0
    %1750 = vmatpush1.bf16.msra.mxu0 0
    %1751 = vmatprep.subr.bf16.mxu0 0
    %1752 = vmatpush1.bf16.msra.mxu0 0
    %1753 = vmatprep.subr.bf16.mxu0 0
    %1754 = vmatpush1.bf16.msra.mxu0 0
    %1755 = vmatprep.subr.bf16.mxu0 0
    %1756 = vmatpush1.bf16.msra.mxu0 0
    %1757 = vmatprep.subr.bf16.mxu0 0
    %1758 = vmatpush1.bf16.msra.mxu0 0
    %1759 = vmatprep.mubr.bf16.mxu0 0
    %1760 = vmatmul.mubr.bf16.gmra.mrb[0].mxu0 %v1726
    %v1761 = vpop.f32.mrb[0].mxu0
    %v1762 = vadd.f32 0.0, %v1761
    %v1763 = vpop.f32.mrb[0].mxu0
    %v1764 = vpop.f32.mrb[0].mxu0
    %v1765 = vpop.f32.mrb[0].mxu0
    %1766 = vdwg.mxu0
    %v1768 = vrot.slane %v1762, 7
    %v1770 = vadd.f32 %v1611, %v1768
    %v1771 = vtanh.pop %v1770
    %v1772 = vpack.c.bf16 %v1771, %v1771
    %v1774 = vshrl.u32 %v1772, 16
    %1777 = vmatprep.subr.bf16.mxu0 0
    %1778 = vmatpush1.bf16.msra.mxu0 %v1668
    %1779 = vmatprep.subr.bf16.mxu0 0
    %1780 = vmatpush1.bf16.msra.mxu0 %v1669
    %1781 = vmatprep.subr.bf16.mxu0 0
    %1782 = vmatpush1.bf16.msra.mxu0 %v1670
    %1783 = vmatprep.subr.bf16.mxu0 0
    %1784 = vmatpush1.bf16.msra.mxu0 %v1671
    %1785 = vmatprep.subr.bf16.mxu0 0
    %1786 = vmatpush1.bf16.msra.mxu0 %v1672
    %1787 = vmatprep.subr.bf16.mxu0 0
    %1788 = vmatpush1.bf16.msra.mxu0 %v1673
    %1789 = vmatprep.subr.bf16.mxu0 0
    %1790 = vmatpush1.bf16.msra.mxu0 %v1674
    %1791 = vmatprep.subr.bf16.mxu0 0
    %1792 = vmatpush1.bf16.msra.mxu0 %v1675
    %1793 = vmatprep.subr.bf16.mxu0 0
    %1794 = vmatpush1.bf16.msra.mxu0 0
    %1795 = vmatprep.subr.bf16.mxu0 0
    %1796 = vmatpush1.bf16.msra.mxu0 0
    %1797 = vmatprep.subr.bf16.mxu0 0
    %1798 = vmatpush1.bf16.msra.mxu0 0
    %1799 = vmatprep.subr.bf16.mxu0 0
    %1800 = vmatpush1.bf16.msra.mxu0 0
    %1801 = vmatprep.subr.bf16.mxu0 0
    %1802 = vmatpush1.bf16.msra.mxu0 0
    %1803 = vmatprep.subr.bf16.mxu0 0
    %1804 = vmatpush1.bf16.msra.mxu0 0
    %1805 = vmatprep.subr.bf16.mxu0 0
    %1806 = vmatpush1.bf16.msra.mxu0 0
    %1807 = vmatprep.subr.bf16.mxu0 0
    %1808 = vmatpush1.bf16.msra.mxu0 0
    %1809 = vmatprep.mubr.bf16.mxu0 0
    %1810 = vmatmul.mubr.bf16.gmra.mrb[0].mxu0 %v1774
    %v1811 = vpop.f32.mrb[0].mxu0
    %v1812 = vadd.f32 0.0, %v1811
    %v1813 = vpop.f32.mrb[0].mxu0
    %v1814 = vpop.f32.mrb[0].mxu0
    %v1815 = vpop.f32.mrb[0].mxu0
    %1816 = vdwg.mxu0
    %v1818 = vrot.slane %v1812, 6
    %v1820 = vadd.f32 %v1611, %v1818
    %v1821 = vtanh.pop %v1820
    %v1822 = vpack.c.bf16 %v1821, %v1821
    %v1824 = vrot.slane %v1822, 1
    %1826 = vmatprep.subr.bf16.mxu0 0
    %1827 = vmatpush1.bf16.msra.mxu0 %v1668
    %1828 = vmatprep.subr.bf16.mxu0 0
    %1829 = vmatpush1.bf16.msra.mxu0 %v1669
    %1830 = vmatprep.subr.bf16.mxu0 0
    %1831 = vmatpush1.bf16.msra.mxu0 %v1670
    %1832 = vmatprep.subr.bf16.mxu0 0
    %1833 = vmatpush1.bf16.msra.mxu0 %v1671
    %1834 = vmatprep.subr.bf16.mxu0 0
    %1835 = vmatpush1.bf16.msra.mxu0 %v1672
    %1836 = vmatprep.subr.bf16.mxu0 0
    %1837 = vmatpush1.bf16.msra.mxu0 %v1673
    %1838 = vmatprep.subr.bf16.mxu0 0
    %1839 = vmatpush1.bf16.msra.mxu0 %v1674
    %1840 = vmatprep.subr.bf16.mxu0 0
    %1841 = vmatpush1.bf16.msra.mxu0 %v1675
    %1842 = vmatprep.subr.bf16.mxu0 0
    %1843 = vmatpush1.bf16.msra.mxu0 0
    %1844 = vmatprep.subr.bf16.mxu0 0
    %1845 = vmatpush1.bf16.msra.mxu0 0
    %1846 = vmatprep.subr.bf16.mxu0 0
    %1847 = vmatpush1.bf16.msra.mxu0 0
    %1848 = vmatprep.subr.bf16.mxu0 0
    %1849 = vmatpush1.bf16.msra.mxu0 0
    %1850 = vmatprep.subr.bf16.mxu0 0
    %1851 = vmatpush1.bf16.msra.mxu0 0
    %1852 = vmatprep.subr.bf16.mxu0 0
    %1853 = vmatpush1.bf16.msra.mxu0 0
    %1854 = vmatprep.subr.bf16.mxu0 0
    %1855 = vmatpush1.bf16.msra.mxu0 0
    %1856 = vmatprep.subr.bf16.mxu0 0
    %1857 = vmatpush1.bf16.msra.mxu0 0
    %1858 = vmatprep.mubr.bf16.mxu0 0
    %1859 = vmatmul.mubr.bf16.gmra.mrb[0].mxu0 %v1824
    %v1860 = vpop.f32.mrb[0].mxu0
    %v1861 = vadd.f32 0.0, %v1860
    %v1862 = vpop.f32.mrb[0].mxu0
    %v1863 = vpop.f32.mrb[0].mxu0
    %v1864 = vpop.f32.mrb[0].mxu0
    %1865 = vdwg.mxu0
    %v1867 = vrot.slane %v1861, 5
    %v1869 = vadd.f32 %v1611, %v1867
    %v1870 = vtanh.pop %v1869
    %v1871 = vpack.c.bf16 %v1870, %v1870
    %v1873 = vshrl.u32 %v1871, 16
    %v1875 = vrot.slane %v1873, 1
    %1877 = vmatprep.subr.bf16.mxu0 0
    %1878 = vmatpush1.bf16.msra.mxu0 %v1668
    %1879 = vmatprep.subr.bf16.mxu0 0
    %1880 = vmatpush1.bf16.msra.mxu0 %v1669
    %1881 = vmatprep.subr.bf16.mxu0 0
    %1882 = vmatpush1.bf16.msra.mxu0 %v1670
    %1883 = vmatprep.subr.bf16.mxu0 0
    %1884 = vmatpush1.bf16.msra.mxu0 %v1671
    %1885 = vmatprep.subr.bf16.mxu0 0
    %1886 = vmatpush1.bf16.msra.mxu0 %v1672
    %1887 = vmatprep.subr.bf16.mxu0 0
    %1888 = vmatpush1.bf16.msra.mxu0 %v1673
    %1889 = vmatprep.subr.bf16.mxu0 0
    %1890 = vmatpush1.bf16.msra.mxu0 %v1674
    %1891 = vmatprep.subr.bf16.mxu0 0
    %1892 = vmatpush1.bf16.msra.mxu0 %v1675
    %1893 = vmatprep.subr.bf16.mxu0 0
    %1894 = vmatpush1.bf16.msra.mxu0 0
    %1895 = vmatprep.subr.bf16.mxu0 0
    %1896 = vmatpush1.bf16.msra.mxu0 0
    %1897 = vmatprep.subr.bf16.mxu0 0
    %1898 = vmatpush1.bf16.msra.mxu0 0
    %1899 = vmatprep.subr.bf16.mxu0 0
    %1900 = vmatpush1.bf16.msra.mxu0 0
    %1901 = vmatprep.subr.bf16.mxu0 0
    %1902 = vmatpush1.bf16.msra.mxu0 0
    %1903 = vmatprep.subr.bf16.mxu0 0
    %1904 = vmatpush1.bf16.msra.mxu0 0
    %1905 = vmatprep.subr.bf16.mxu0 0
    %1906 = vmatpush1.bf16.msra.mxu0 0
    %1907 = vmatprep.subr.bf16.mxu0 0
    %1908 = vmatpush1.bf16.msra.mxu0 0
    %1909 = vmatprep.mubr.bf16.mxu0 0
    %1910 = vmatmul.mubr.bf16.gmra.mrb[0].mxu0 %v1875
    %v1911 = vpop.f32.mrb[0].mxu0
    %v1912 = vadd.f32 0.0, %v1911
    %v1913 = vpop.f32.mrb[0].mxu0
    %v1914 = vpop.f32.mrb[0].mxu0
    %v1915 = vpop.f32.mrb[0].mxu0
    %1916 = vdwg.mxu0
    %v1918 = vrot.slane %v1912, 4
    %v1920 = vadd.f32 %v1611, %v1918
    %v1921 = vtanh.pop %v1920
    %v1922 = vpack.c.bf16 %v1921, %v1921
    %v1924 = vrot.slane %v1922, 2
    %1926 = vmatprep.subr.bf16.mxu0 0
    %1927 = vmatpush1.bf16.msra.mxu0 %v1668
    %1928 = vmatprep.subr.bf16.mxu0 0
    %1929 = vmatpush1.bf16.msra.mxu0 %v1669
    %1930 = vmatprep.subr.bf16.mxu0 0
    %1931 = vmatpush1.bf16.msra.mxu0 %v1670
    %1932 = vmatprep.subr.bf16.mxu0 0
    %1933 = vmatpush1.bf16.msra.mxu0 %v1671
    %1934 = vmatprep.subr.bf16.mxu0 0
    %1935 = vmatpush1.bf16.msra.mxu0 %v1672
    %1936 = vmatprep.subr.bf16.mxu0 0
    %1937 = vmatpush1.bf16.msra.mxu0 %v1673
    %1938 = vmatprep.subr.bf16.mxu0 0
    %1939 = vmatpush1.bf16.msra.mxu0 %v1674
    %1940 = vmatprep.subr.bf16.mxu0 0
    %1941 = vmatpush1.bf16.msra.mxu0 %v1675
    %1942 = vmatprep.subr.bf16.mxu0 0
    %1943 = vmatpush1.bf16.msra.mxu0 0
    %1944 = vmatprep.subr.bf16.mxu0 0
    %1945 = vmatpush1.bf16.msra.mxu0 0
    %1946 = vmatprep.subr.bf16.mxu0 0
    %1947 = vmatpush1.bf16.msra.mxu0 0
    %1948 = vmatprep.subr.bf16.mxu0 0
    %1949 = vmatpush1.bf16.msra.mxu0 0
    %1950 = vmatprep.subr.bf16.mxu0 0
    %1951 = vmatpush1.bf16.msra.mxu0 0
    %1952 = vmatprep.subr.bf16.mxu0 0
    %1953 = vmatpush1.bf16.msra.mxu0 0
    %1954 = vmatprep.subr.bf16.mxu0 0
    %1955 = vmatpush1.bf16.msra.mxu0 0
    %1956 = vmatprep.subr.bf16.mxu0 0
    %1957 = vmatpush1.bf16.msra.mxu0 0
    %1958 = vmatprep.mubr.bf16.mxu0 0
    %1959 = vmatmul.mubr.bf16.gmra.mrb[0].mxu0 %v1924
    %v1960 = vpop.f32.mrb[0].mxu0
    %v1961 = vadd.f32 0.0, %v1960
    %v1962 = vpop.f32.mrb[0].mxu0
    %v1963 = vpop.f32.mrb[0].mxu0
    %v1964 = vpop.f32.mrb[0].mxu0
    %1965 = vdwg.mxu0
    %v1967 = vrot.slane %v1961, 3
    %v1969 = vadd.f32 %v1611, %v1967
    %v1970 = vtanh.pop %v1969
    %v1971 = vpack.c.bf16 %v1970, %v1970
    %v1972 = vsel %vm523, %v1726, %v1772
    %v1975 = vsel %vm525, %v1972, %v1822
    %v1977 = vsel %vm532, %v1975, %v1871
    %v1980 = vsel %vm534, %v1977, %v1922
    %v1982 = vsel %vm541, %v1980, %v1971
    %v1983 = vld [vmem:[%s5] sm:$0xf]
    %v1984 = vld [vmem:[%s5 + $0x4] sm:$0xf]
    %v1985 = vld [vmem:[%s5 + $0x8] sm:$0xf]
    %v1986 = vld [vmem:[%s5 + $0xc] sm:$0xf]
    %v1987 = vld [vmem:[%s5 + $0x10] sm:$0xf]
    %v1988 = vld [vmem:[%s5 + $0x14] sm:$0xf]
    %v1989 = vld [vmem:[%s5 + $0x18] sm:$0xf]
    %v1990 = vld [vmem:[%s5 + $0x1c] sm:$0xf]
    %v1991 = vld [vmem:[%s5 + $0x20] sm:$0xf]
    %v1992 = vld [vmem:[%s5 + $0x24] sm:$0xf]
    %v1993 = vld [vmem:[%s5 + $0x28] sm:$0xf]
    %v1994 = vld [vmem:[%s5 + $0x2c] sm:$0xf]
    %v1995 = vld [vmem:[%s5 + $0x30] sm:$0xf]
    %v1996 = vld [vmem:[%s5 + $0x34] sm:$0xf]
    %v1997 = vld [vmem:[%s5 + $0x38] sm:$0xf]
    %v1998 = vld [vmem:[%s5 + $0x3c] sm:$0xf]
    %v1999 = vld [vmem:[%s6] sm:$0x1]
    %v2001 = vlaneseq
    %v2002 = vshrl.u32 %v2001, 7
    %v2003 = vsub.s32 0, %v2002
    %v2004 = vrot.slane %v1999, %v2003
    %v2022 = vunpack.c.l.b16 %v1983
    %v2023 = vunpack.c.l.b16 %v1984
    %v2024 = vunpack.c.l.b16 %v1985
    %v2025 = vunpack.c.l.b16 %v1986
    %v2026 = vunpack.c.l.b16 %v1987
    %v2027 = vunpack.c.l.b16 %v1988
    %v2028 = vunpack.c.l.b16 %v1989
    %v2029 = vunpack.c.l.b16 %v1990
    %v2030 = vunpack.c.l.b16 %v1991
    %v2031 = vunpack.c.l.b16 %v1992
    %v2032 = vunpack.c.l.b16 %v1993
    %v2033 = vunpack.c.l.b16 %v1994
    %v2034 = vunpack.c.l.b16 %v1995
    %v2035 = vunpack.c.l.b16 %v1996
    %v2036 = vunpack.c.l.b16 %v1997
    %v2037 = vunpack.c.l.b16 %v1998
    %v2038 = vpack.c.b16 %v2023, %v2022
    %v2039 = vpack.c.b16 %v2025, %v2024
    %v2040 = vpack.c.b16 %v2027, %v2026
    %v2041 = vpack.c.b16 %v2029, %v2028
    %v2042 = vpack.c.b16 %v2031, %v2030
    %v2043 = vpack.c.b16 %v2033, %v2032
    %v2044 = vpack.c.b16 %v2035, %v2034
    %v2045 = vpack.c.b16 %v2037, %v2036
    %2054 = vmatprep.subr.bf16.mxu0 0
    %2055 = vmatpush1.bf16.msra.mxu0 %v2038
    %2056 = vmatprep.subr.bf16.mxu0 0
    %2057 = vmatpush1.bf16.msra.mxu0 %v2039
    %2058 = vmatprep.subr.bf16.mxu0 0
    %2059 = vmatpush1.bf16.msra.mxu0 %v2040
    %2060 = vmatprep.subr.bf16.mxu0 0
    %2061 = vmatpush1.bf16.msra.mxu0 %v2041
    %2062 = vmatprep.subr.bf16.mxu0 0
    %2063 = vmatpush1.bf16.msra.mxu0 %v2042
    %2064 = vmatprep.subr.bf16.mxu0 0
    %2065 = vmatpush1.bf16.msra.mxu0 %v2043
    %2066 = vmatprep.subr.bf16.mxu0 0
    %2067 = vmatpush1.bf16.msra.mxu0 %v2044
    %2068 = vmatprep.subr.bf16.mxu0 0
    %2069 = vmatpush1.bf16.msra.mxu0 %v2045
    %2070 = vmatprep.subr.bf16.mxu0 0
    %2071 = vmatpush1.bf16.msra.mxu0 0
    %2072 = vmatprep.subr.bf16.mxu0 0
    %2073 = vmatpush1.bf16.msra.mxu0 0
    %2074 = vmatprep.subr.bf16.mxu0 0
    %2075 = vmatpush1.bf16.msra.mxu0 0
    %2076 = vmatprep.subr.bf16.mxu0 0
    %2077 = vmatpush1.bf16.msra.mxu0 0
    %2078 = vmatprep.subr.bf16.mxu0 0
    %2079 = vmatpush1.bf16.msra.mxu0 0
    %2080 = vmatprep.subr.bf16.mxu0 0
    %2081 = vmatpush1.bf16.msra.mxu0 0
    %2082 = vmatprep.subr.bf16.mxu0 0
    %2083 = vmatpush1.bf16.msra.mxu0 0
    %2084 = vmatprep.subr.bf16.mxu0 0
    %2085 = vmatpush1.bf16.msra.mxu0 0
    %2086 = vmatprep.mubr.bf16.mxu0 0
    %2087 = vmatmul.mubr.bf16.gmra.mrb[0].mxu0 %v1982
    %v2088 = vpop.f32.mrb[0].mxu0
    %v2089 = vadd.f32 %v2004, %v2088
    %v2090 = vpop.f32.mrb[0].mxu0
    %v2091 = vpop.f32.mrb[0].mxu0
    %v2092 = vpop.f32.mrb[0].mxu0
    %2093 = vdwg.mxu0
    %vm2094 = vcmask 1045504
    %v2095 = vsel %vm2094, %v2089, -inf
    %2096 = vmax.xlane.f32.xlu0 %v2095
    %v2097 = vpop.xlane.xlu0 %2096
    %v2098 = vsub.f32 %v2089, %v2097
    %v2099 = vmul.f32 %v2098, 1.442695
    %v2100 = vpow.pop %v2099
    %v2101 = vsel %vm2094, %v2100, 0.0
    %2102 = vadd.xlane.f32.xlu0 %v2101
    %v2103 = vpop.xlane.xlu0 %2102
    %v2104 = vrcp.pop %v2103
    %v2105 = vmul.f32 %v2100, %v2104
    %2106 = vst [vmem:[%s7] sm:$0x3f] %v2105
    // Predicated region
    $region38: #{rnn_forward.1} parent=1 // pred_check
      _
    $region39: #{rnn_forward.1} parent=1 // pred_check_branch
      %2108 = sbr.rel (0) target = $region41
    $region40: #{rnn_forward.1} parent=1 // pred_region
      _
    $region41: #{rnn_forward.1} parent=1 // pred_fallthru
      _
    // Predicated region
    $region42: #{rnn_forward.1} parent=1 // pred_check
      _
    $region43: #{rnn_forward.1} parent=1 // pred_check_branch
      %2110 = sbr.rel (0) target = $region45
    $region44: #{rnn_forward.1} parent=1 // pred_region
      _
    $region45: #{rnn_forward.1} parent=1 // pred_fallthru
      _
    %2111 = vsyncpa [#allocation3], 1
    %2112 = vsyncpa [#allocation5], 1

</llo_original>
